<compile_context>
chip_gen: v6e
topology: v6e:2x2x1
jax: 0.10.0
libtpu: 0.0.40
codegen_flags: <defaults>
</compile_context>

<pallas_src>
import math

import jax
import jax.numpy as jnp
from jax import lax
from jax.experimental import pallas as pl
from jax.experimental.pallas import tpu as pltpu

# ---------------- synthetic BERT config (small shapes) ----------------
VOCAB = 100
TYPE_VOCAB = 2
MAX_POS = 64
HIDDEN = 32
N_HEADS = 4
HEAD_DIM = HIDDEN // N_HEADS
INTERMEDIATE = 64
N_LAYERS = 2
OUTPUT_DIM = 16
LN_EPS = 1e-12
ADD_LINEAR = True  # BertEncoder(add_linear=True) -> pooler path + extra Linear

# ---------------- packed-parameter layout constants ----------------
# weight slab: (N_W_BLOCKS, 64, 128) bf16, each matrix zero-padded into a block
W_PER_LAYER = 4          # qkv, attn_out, ffn_in, ffn_out
W_POOL = N_LAYERS * W_PER_LAYER        # pooler weight block index
W_ADD = W_POOL + 1                     # additional_linear weight block index
N_W_BLOCKS = W_ADD + 1
WBLK_R, WBLK_C = 64, 128

# vector slab: (N_VEC_ROWS, 128) f32, one parameter vector per row
ROW_EMB_G, ROW_EMB_B, ROW_POOL_B, ROW_ADD_B = 0, 1, 2, 3
ROW_LAYER0 = 4
ROWS_PER_LAYER = 8       # qkv_b, ao_b, al_g, al_b, fi_b, fo_b, fl_g, fl_b
N_VEC_ROWS = ROW_LAYER0 + N_LAYERS * ROWS_PER_LAYER


# ---------------- in-kernel helpers (pure functions on values) ----------------
def _gelu_tanh(x):
    # TODO(synk): HF BERT uses exact erf-GELU; tanh approximation used here for
    # guaranteed Mosaic lowering of the elementwise path.
    c = math.sqrt(2.0 / math.pi)
    return 0.5 * x * (1.0 + jnp.tanh(c * (x + 0.044715 * x * x * x)))


def _layer_norm(x, g, b, eps=LN_EPS):
    mu = jnp.mean(x, axis=-1, keepdims=True)
    var = jnp.mean((x - mu) ** 2, axis=-1, keepdims=True)
    return (x - mu) * lax.rsqrt(var + eps) * g + b


# ---------------- fused encoder kernel ----------------
def _make_encoder_kernel(B, S):
    BS = B * S
    scale = 1.0 / math.sqrt(HEAD_DIM)
    f32 = jnp.float32
    bf16 = jnp.bfloat16

    def kernel(emb_ref, w_ref, vec_ref, msk_ref, out_ref, hbuf_ref):
        def vec(row, n):
            return vec_ref[row:row + 1, :n]            # (1, n) f32

        # ---- embeddings LayerNorm (embedding dropout p=0.1 is identity) ----
        h = _layer_norm(emb_ref[...].astype(f32),
                        vec(ROW_EMB_G, HIDDEN), vec(ROW_EMB_B, HIDDEN))  # (BS,H)

        # ---- precomputed masks (wrapper-built, loaded once) ----
        attn_bias = msk_ref[0][:, :BS]                 # (NH*BS, BS) additive
        head_mask = msk_ref[1]                         # (NH*BS, H)  0/1

        for li in range(N_LAYERS):
            wb = li * W_PER_LAYER
            w_qkv = w_ref[wb + 0][:HIDDEN, :]          # (H,128) bf16, lanes 96: zero
            w_ao = w_ref[wb + 1][:HIDDEN, :]           # (H,128) bf16, lanes 32: zero
            w_fi = w_ref[wb + 2][:HIDDEN, :]           # (H,128) bf16, lanes 64: zero
            w_fo = w_ref[wb + 3]                       # (64,128) bf16, lanes 32: zero
            r = ROW_LAYER0 + li * ROWS_PER_LAYER

            # ---- fused QKV projection: one [BS,H]x[H,3H] bf16 MXU pass ----
            qkv = jnp.dot(h.astype(bf16), w_qkv,
                          preferred_element_type=f32)[:, :3 * HIDDEN]
            qkv = qkv + vec_ref[r + 0:r + 1, :3 * HIDDEN]       # (BS, 3H)
            q = qkv[:, 0 * HIDDEN:1 * HIDDEN]
            k = qkv[:, 1 * HIDDEN:2 * HIDDEN]
            v = qkv[:, 2 * HIDDEN:3 * HIDDEN]

            # ---- head-packed attention: heads stacked along sublanes ----
            # q_packed row (hd*BS + i) holds q[i] restricted to head hd's lanes,
            # so one (NH*BS,H)x(H,BS) matmul yields all per-head score blocks.
            q_packed = jnp.concatenate([q] * N_HEADS, axis=0) * head_mask
            s = lax.dot_general(q_packed.astype(bf16), k.astype(bf16),
                                (((1,), (1,)), ((), ())),
                                preferred_element_type=f32)
            s = s * scale + attn_bias                  # (NH*BS, BS)

            # one softmax over the whole packed tile (single EUP batch)
            m = jnp.max(s, axis=-1, keepdims=True)
            p = jnp.exp(s - m)
            l = jnp.sum(p, axis=-1, keepdims=True)
            p = p * pl.reciprocal(l, approx=True)

            # one P@V matmul; head_mask keeps only head hd's V columns per
            # row block, then summing row blocks gives the concat-heads output.
            pv = jnp.dot(p.astype(bf16), v.astype(bf16),
                         preferred_element_type=f32) * head_mask   # (NH*BS, H)
            o = pv[0:BS, :]
            for hd in range(1, N_HEADS):
                o = o + pv[hd * BS:(hd + 1) * BS, :]               # (BS, H)

            attn = jnp.dot(o.astype(bf16), w_ao,
                           preferred_element_type=f32)[:, :HIDDEN]
            attn = attn + vec_ref[r + 1:r + 2, :HIDDEN]
            # fused residual add + LayerNorm (attention dropout = identity)
            h = _layer_norm(attn + h,
                            vec_ref[r + 2:r + 3, :HIDDEN],
                            vec_ref[r + 3:r + 4, :HIDDEN])

            # ---- FFN with fused GELU and fused residual + LayerNorm ----
            ffn = jnp.dot(h.astype(bf16), w_fi,
                          preferred_element_type=f32)[:, :INTERMEDIATE]
            ffn = _gelu_tanh(ffn + vec_ref[r + 4:r + 5, :INTERMEDIATE])
            ffn = jnp.dot(ffn.astype(bf16), w_fo,
                          preferred_element_type=f32)[:, :HIDDEN]
            ffn = ffn + vec_ref[r + 5:r + 6, :HIDDEN]
            h = _layer_norm(ffn + h,
                            vec_ref[r + 6:r + 7, :HIDDEN],
                            vec_ref[r + 7:r + 8, :HIDDEN])

        # ---- pooler on [CLS] rows (token 0 of every batch item) ----
        # strided sublane read from VMEM scratch instead of a one-hot matmul
        hbuf_ref[...] = h
        cls = hbuf_ref[pl.ds(0, B, stride=S), :]                   # (B, H)
        pooled = jnp.tanh(
            jnp.dot(cls.astype(bf16), w_ref[W_POOL][:HIDDEN, :],
                    preferred_element_type=f32)[:, :HIDDEN]
            + vec(ROW_POOL_B, HIDDEN))

        # ---- additional_linear (dropout p=0.1 identity at inference) ----
        res = (jnp.dot(pooled.astype(bf16), w_ref[W_ADD][:HIDDEN, :],
                       preferred_element_type=f32)[:, :OUTPUT_DIM]
               + vec(ROW_ADD_B, OUTPUT_DIM))                       # (B, OUT)
        out_ref[...] = res.astype(out_ref.dtype)

    return kernel


# ---------------- deterministic parameter init (same as reference) ----------------
def _dense(key, in_dim, out_dim):
    kw, _ = jax.random.split(key)
    return {
        "w": jax.random.normal(kw, (in_dim, out_dim), jnp.float32) * 0.02,
        "b": jnp.zeros((out_dim,), jnp.float32),
    }


def init_bert_params(key):
    keys = jax.random.split(key, 8 + N_LAYERS)
    params = {
        "word_emb": jax.random.normal(keys[0], (VOCAB, HIDDEN), jnp.float32) * 0.02,
        "pos_emb": jax.random.normal(keys[1], (MAX_POS, HIDDEN), jnp.float32) * 0.02,
        "type_emb": jax.random.normal(keys[2], (TYPE_VOCAB, HIDDEN), jnp.float32) * 0.02,
        "emb_ln_g": jnp.ones((HIDDEN,), jnp.float32),
        "emb_ln_b": jnp.zeros((HIDDEN,), jnp.float32),
        "pooler": _dense(keys[3], HIDDEN, HIDDEN),
        "layers": [],
    }
    for li in range(N_LAYERS):
        lk = jax.random.split(keys[8 + li], 6)
        params["layers"].append({
            "q": _dense(lk[0], HIDDEN, HIDDEN),
            "k": _dense(lk[1], HIDDEN, HIDDEN),
            "v": _dense(lk[2], HIDDEN, HIDDEN),
            "attn_out": _dense(lk[3], HIDDEN, HIDDEN),
            "attn_ln_g": jnp.ones((HIDDEN,), jnp.float32),
            "attn_ln_b": jnp.zeros((HIDDEN,), jnp.float32),
            "ffn_in": _dense(lk[4], HIDDEN, INTERMEDIATE),
            "ffn_out": _dense(lk[5], INTERMEDIATE, HIDDEN),
            "ffn_ln_g": jnp.ones((HIDDEN,), jnp.float32),
            "ffn_ln_b": jnp.zeros((HIDDEN,), jnp.float32),
        })
    return params


# ---------------- wrapper-side parameter packing ----------------
def _pack_weight_block(w):
    blk = jnp.zeros((WBLK_R, WBLK_C), jnp.bfloat16)
    return blk.at[: w.shape[0], : w.shape[1]].set(w.astype(jnp.bfloat16))


def _pack_vec_row(v):
    return jnp.zeros((WBLK_C,), jnp.float32).at[: v.shape[0]].set(
        v.astype(jnp.float32))


# ---------------- forward pass ----------------
def bert_encoder_forward(params, token_ids, segment_ids, attention_mask):
    """BertEncoder.forward (layer_pulled unused by the simplified forward)."""
    B, S = token_ids.shape
    BS = B * S
    assert BS <= HIDDEN, "mask-slab packing assumes B*S <= HIDDEN"
    bert = params["bert"]

    # embeddings (gathers are glue; everything else is one fused Pallas kernel)
    pos_ids = jnp.arange(S, dtype=jnp.int32)[None, :]
    emb = (jnp.take(bert["word_emb"], token_ids, axis=0)
           + jnp.take(bert["pos_emb"], pos_ids, axis=0)
           + jnp.take(bert["type_emb"], segment_ids, axis=0))
    emb = emb.reshape(BS, HIDDEN).astype(jnp.float32)

    # ---- slab 1: all matmul weights as zero-padded bf16 (64,128) blocks ----
    layers = bert["layers"]
    wblocks = []
    vrows = [bert["emb_ln_g"], bert["emb_ln_b"],
             bert["pooler"]["b"], params["add_linear"]["b"]]
    for lp in layers:
        wblocks.append(jnp.concatenate(
            [lp["q"]["w"], lp["k"]["w"], lp["v"]["w"]], axis=1))   # (H, 3H)
        wblocks.append(lp["attn_out"]["w"])                        # (H, H)
        wblocks.append(lp["ffn_in"]["w"])                          # (H, I)
        wblocks.append(lp["ffn_out"]["w"])                         # (I, H)
        vrows += [
            jnp.concatenate([lp["q"]["b"], lp["k"]["b"], lp["v"]["b"]], axis=0),
            lp["attn_out"]["b"], lp["attn_ln_g"], lp["attn_ln_b"],
            lp["ffn_in"]["b"], lp["ffn_out"]["b"],
            lp["ffn_ln_g"], lp["ffn_ln_b"],
        ]
    wblocks += [bert["pooler"]["w"], params["add_linear"]["w"]]
    wslab = jnp.stack([_pack_weight_block(w) for w in wblocks])    # (10,64,128) bf16

    # ---- slab 2: every bias / LN gain / beta as one 128-lane f32 row ----
    vecs = jnp.stack([_pack_vec_row(v) for v in vrows])            # (20,128) f32

    # ---- slab 3: precomputed masks (additive bias + head block mask) ----
    batch_id = jnp.arange(BS, dtype=jnp.int32) // S
    cross = jnp.where(batch_id[:, None] == batch_id[None, :],
                      0.0, -1e9).astype(jnp.float32)               # (BS,BS)
    pad = (1.0 - attention_mask.astype(jnp.float32).reshape(1, BS)) * -10000.0
    attn_bias = jnp.tile(cross + pad, (N_HEADS, 1))                # (NH*BS,BS)
    head_mask = (jnp.arange(HIDDEN)[None, :] // HEAD_DIM
                 == jnp.arange(N_HEADS * BS)[:, None] // BS
                 ).astype(jnp.float32)                             # (NH*BS,H)
    masks = jnp.stack([jnp.pad(attn_bias, ((0, 0), (0, HIDDEN - BS))),
                       head_mask])                                 # (2,NH*BS,H)

    # TODO(synk): this fused kernel implements the add_linear=True configuration
    # (pooler + additional_linear); add_linear=False would return seq_out[:,0,:].
    kernel = _make_encoder_kernel(B, S)
    out = pl.pallas_call(
        kernel,
        out_shape=jax.ShapeDtypeStruct((B, OUTPUT_DIM), jnp.float32),
        scratch_shapes=[pltpu.VMEM((BS, HIDDEN), jnp.float32)],
    )(emb, wslab, vecs, masks)
    return out


# ---------------- main ----------------
if __name__ == "__main__":
    key = jax.random.PRNGKey(0)
    kp, ka, kt = jax.random.split(key, 3)

    bert_params = init_bert_params(kp)
    kaw, _ = jax.random.split(ka)
    add_linear_params = {
        "w": jax.random.normal(kaw, (HIDDEN, OUTPUT_DIM), jnp.float32) * 0.02,
        "b": jnp.zeros((OUTPUT_DIM,), jnp.float32),
    }
    params = {"bert": bert_params, "add_linear": add_linear_params}

    B, S = 2, 8
    token_ids = jax.random.randint(kt, (B, S), 0, VOCAB, dtype=jnp.int32)
    segment_ids = jnp.zeros((B, S), jnp.int32)
    # last two tokens of batch item 1 are padding (exercises the mask path)
    attention_mask = jnp.ones((B, S), jnp.float32).at[1, 6:].set(0.0)

    fwd = jax.jit(bert_encoder_forward)
    out = fwd(params, token_ids, segment_ids, attention_mask)
    out = jax.block_until_ready(out)
    assert out.shape == (B, OUTPUT_DIM) and out.dtype == jnp.float32
    assert bool(jnp.all(jnp.isfinite(out)))
    print("KERNEL_OK")
</pallas_src>

<mosaic_0001>
module attributes {stable_mosaic.version = 11 : i64} {
  func.func @kernel(%arg0: memref<16x32xf32, #tpu.memory_space<vmem>>, %arg1: memref<10x64x128xbf16, #tpu.memory_space<vmem>>, %arg2: memref<20x128xf32, #tpu.memory_space<vmem>>, %arg3: memref<2x64x32xf32, #tpu.memory_space<vmem>>, %arg4: memref<2x16xf32, #tpu.memory_space<vmem>>, %arg5: memref<16x32xf32, #tpu.memory_space<vmem>>) attributes {dimension_semantics = [], scalar_prefetch = 0 : i64, scratch_operands = 1 : i64, tpu.core_type = #tpu.core_type<tc>} {
    %c0 = arith.constant 0 : index
    %c0_0 = arith.constant 0 : index
    %0 = vector.load %arg0[%c0, %c0_0] : memref<16x32xf32, #tpu.memory_space<vmem>>, vector<16x32xf32>
    %c0_1 = arith.constant 0 : index
    %c0_2 = arith.constant 0 : index
    %1 = vector.load %arg2[%c0_1, %c0_2] : memref<20x128xf32, #tpu.memory_space<vmem>>, vector<1x32xf32>
    %c1 = arith.constant 1 : index
    %c0_3 = arith.constant 0 : index
    %2 = vector.load %arg2[%c1, %c0_3] : memref<20x128xf32, #tpu.memory_space<vmem>>, vector<1x32xf32>
    %cst = arith.constant dense<0.000000e+00> : vector<16xf32>
    %3 = vector.multi_reduction <add>, %0, %cst [1] : vector<16x32xf32> to vector<16xf32>
    %4 = vector.shape_cast %3 : vector<16xf32> to vector<16x1xf32>
    %cst_4 = arith.constant 3.200000e+01 : f32
    %5 = vector.broadcast %cst_4 : f32 to vector<16x1xf32>
    %6 = arith.divf %4, %5 : vector<16x1xf32>
    %7 = vector.broadcast %6 : vector<16x1xf32> to vector<16x32xf32>
    %8 = arith.subf %0, %7 : vector<16x32xf32>
    %9 = arith.mulf %8, %8 : vector<16x32xf32>
    %cst_5 = arith.constant dense<0.000000e+00> : vector<16xf32>
    %10 = vector.multi_reduction <add>, %9, %cst_5 [1] : vector<16x32xf32> to vector<16xf32>
    %11 = vector.shape_cast %10 : vector<16xf32> to vector<16x1xf32>
    %cst_6 = arith.constant 3.200000e+01 : f32
    %12 = vector.broadcast %cst_6 : f32 to vector<16x1xf32>
    %13 = arith.divf %11, %12 : vector<16x1xf32>
    %14 = vector.broadcast %6 : vector<16x1xf32> to vector<16x32xf32>
    %15 = arith.subf %0, %14 : vector<16x32xf32>
    %cst_7 = arith.constant 9.99999996E-13 : f32
    %16 = vector.broadcast %cst_7 : f32 to vector<16x1xf32>
    %17 = arith.addf %13, %16 : vector<16x1xf32>
    %18 = math.rsqrt %17 : vector<16x1xf32>
    %19 = vector.broadcast %18 : vector<16x1xf32> to vector<16x32xf32>
    %20 = arith.mulf %15, %19 : vector<16x32xf32>
    %21 = vector.broadcast %1 : vector<1x32xf32> to vector<16x32xf32>
    %22 = arith.mulf %20, %21 : vector<16x32xf32>
    %23 = vector.broadcast %2 : vector<1x32xf32> to vector<16x32xf32>
    %24 = arith.addf %22, %23 : vector<16x32xf32>
    %c0_8 = arith.constant 0 : index
    %c0_9 = arith.constant 0 : index
    %c0_10 = arith.constant 0 : index
    %25 = vector.load %arg3[%c0_8, %c0_9, %c0_10] : memref<2x64x32xf32, #tpu.memory_space<vmem>>, vector<1x64x32xf32>
    %26 = vector.shape_cast %25 : vector<1x64x32xf32> to vector<64x32xf32>
    %27 = vector.extract_strided_slice %26 {offsets = [0, 0], sizes = [64, 16], strides = [1, 1]} : vector<64x32xf32> to vector<64x16xf32>
    %c1_11 = arith.constant 1 : index
    %c0_12 = arith.constant 0 : index
    %c0_13 = arith.constant 0 : index
    %28 = vector.load %arg3[%c1_11, %c0_12, %c0_13] : memref<2x64x32xf32, #tpu.memory_space<vmem>>, vector<1x64x32xf32>
    %29 = vector.shape_cast %28 : vector<1x64x32xf32> to vector<64x32xf32>
    %c0_14 = arith.constant 0 : index
    %c0_15 = arith.constant 0 : index
    %c0_16 = arith.constant 0 : index
    %30 = vector.load %arg1[%c0_14, %c0_15, %c0_16] : memref<10x64x128xbf16, #tpu.memory_space<vmem>>, vector<1x64x128xbf16>
    %31 = vector.shape_cast %30 : vector<1x64x128xbf16> to vector<64x128xbf16>
    %32 = vector.extract_strided_slice %31 {offsets = [0, 0], sizes = [32, 128], strides = [1, 1]} : vector<64x128xbf16> to vector<32x128xbf16>
    %c1_17 = arith.constant 1 : index
    %c0_18 = arith.constant 0 : index
    %c0_19 = arith.constant 0 : index
    %33 = vector.load %arg1[%c1_17, %c0_18, %c0_19] : memref<10x64x128xbf16, #tpu.memory_space<vmem>>, vector<1x64x128xbf16>
    %34 = vector.shape_cast %33 : vector<1x64x128xbf16> to vector<64x128xbf16>
    %35 = vector.extract_strided_slice %34 {offsets = [0, 0], sizes = [32, 128], strides = [1, 1]} : vector<64x128xbf16> to vector<32x128xbf16>
    %c2 = arith.constant 2 : index
    %c0_20 = arith.constant 0 : index
    %c0_21 = arith.constant 0 : index
    %36 = vector.load %arg1[%c2, %c0_20, %c0_21] : memref<10x64x128xbf16, #tpu.memory_space<vmem>>, vector<1x64x128xbf16>
    %37 = vector.shape_cast %36 : vector<1x64x128xbf16> to vector<64x128xbf16>
    %38 = vector.extract_strided_slice %37 {offsets = [0, 0], sizes = [32, 128], strides = [1, 1]} : vector<64x128xbf16> to vector<32x128xbf16>
    %c3 = arith.constant 3 : index
    %c0_22 = arith.constant 0 : index
    %c0_23 = arith.constant 0 : index
    %39 = vector.load %arg1[%c3, %c0_22, %c0_23] : memref<10x64x128xbf16, #tpu.memory_space<vmem>>, vector<1x64x128xbf16>
    %40 = vector.shape_cast %39 : vector<1x64x128xbf16> to vector<64x128xbf16>
    %41 = arith.truncf %24 : vector<16x32xf32> to vector<16x32xbf16>
    %cst_24 = arith.constant dense<0.000000e+00> : vector<16x128xf32>
    %42 = tpu.matmul %41, %32, %cst_24 {dimension_numbers = #tpu.dot_dimension_numbers<[1], [0], [0], [1], [0, 0, 1, 1], [], []>} : vector<16x32xbf16>, vector<32x128xbf16>, vector<16x128xf32> -> vector<16x128xf32>
    %43 = vector.extract_strided_slice %42 {offsets = [0, 0], sizes = [16, 96], strides = [1, 1]} : vector<16x128xf32> to vector<16x96xf32>
    %c4 = arith.constant 4 : index
    %c0_25 = arith.constant 0 : index
    %44 = vector.load %arg2[%c4, %c0_25] : memref<20x128xf32, #tpu.memory_space<vmem>>, vector<1x96xf32>
    %45 = vector.broadcast %44 : vector<1x96xf32> to vector<16x96xf32>
    %46 = arith.addf %43, %45 : vector<16x96xf32>
    %47 = vector.extract_strided_slice %46 {offsets = [0, 0], sizes = [16, 32], strides = [1, 1]} : vector<16x96xf32> to vector<16x32xf32>
    %48 = vector.extract_strided_slice %46 {offsets = [0, 32], sizes = [16, 32], strides = [1, 1]} : vector<16x96xf32> to vector<16x32xf32>
    %49 = vector.extract_strided_slice %46 {offsets = [0, 64], sizes = [16, 32], strides = [1, 1]} : vector<16x96xf32> to vector<16x32xf32>
    %50 = tpu.concatenate %47, %47, %47, %47 in 0 : vector<16x32xf32>, vector<16x32xf32>, vector<16x32xf32>, vector<16x32xf32> -> vector<64x32xf32>
    %51 = arith.mulf %50, %29 : vector<64x32xf32>
    %52 = arith.truncf %51 : vector<64x32xf32> to vector<64x32xbf16>
    %53 = arith.truncf %48 : vector<16x32xf32> to vector<16x32xbf16>
    %cst_26 = arith.constant dense<0.000000e+00> : vector<64x16xf32>
    %54 = tpu.matmul %52, %53, %cst_26 {dimension_numbers = #tpu.dot_dimension_numbers<[1], [1], [0], [0], [0, 0, 1, 0], [], []>} : vector<64x32xbf16>, vector<16x32xbf16>, vector<64x16xf32> -> vector<64x16xf32>
    %cst_27 = arith.constant 0.353553385 : f32
    %55 = vector.broadcast %cst_27 : f32 to vector<64x16xf32>
    %56 = arith.mulf %54, %55 : vector<64x16xf32>
    %57 = arith.addf %56, %27 : vector<64x16xf32>
    %cst_28 = arith.constant dense<0xFF800000> : vector<64xf32>
    %58 = vector.multi_reduction <maximumf>, %57, %cst_28 [1] : vector<64x16xf32> to vector<64xf32>
    %59 = vector.shape_cast %58 : vector<64xf32> to vector<64x1xf32>
    %60 = vector.broadcast %59 : vector<64x1xf32> to vector<64x16xf32>
    %61 = arith.subf %57, %60 : vector<64x16xf32>
    %62 = math.exp %61 : vector<64x16xf32>
    %cst_29 = arith.constant dense<0.000000e+00> : vector<64xf32>
    %63 = vector.multi_reduction <add>, %62, %cst_29 [1] : vector<64x16xf32> to vector<64xf32>
    %64 = vector.shape_cast %63 : vector<64xf32> to vector<64x1xf32>
    %65 = tpu.reciprocal %64 {approx = true} : vector<64x1xf32> -> vector<64x1xf32>
    %66 = vector.broadcast %65 : vector<64x1xf32> to vector<64x16xf32>
    %67 = arith.mulf %62, %66 : vector<64x16xf32>
    %68 = arith.truncf %67 : vector<64x16xf32> to vector<64x16xbf16>
    %69 = arith.truncf %49 : vector<16x32xf32> to vector<16x32xbf16>
    %cst_30 = arith.constant dense<0.000000e+00> : vector<64x32xf32>
    %70 = tpu.matmul %68, %69, %cst_30 {dimension_numbers = #tpu.dot_dimension_numbers<[1], [0], [0], [1], [0, 0, 1, 1], [], []>} : vector<64x16xbf16>, vector<16x32xbf16>, vector<64x32xf32> -> vector<64x32xf32>
    %71 = arith.mulf %70, %29 : vector<64x32xf32>
    %72 = vector.extract_strided_slice %71 {offsets = [0, 0], sizes = [16, 32], strides = [1, 1]} : vector<64x32xf32> to vector<16x32xf32>
    %73 = vector.extract_strided_slice %71 {offsets = [16, 0], sizes = [16, 32], strides = [1, 1]} : vector<64x32xf32> to vector<16x32xf32>
    %74 = arith.addf %72, %73 : vector<16x32xf32>
    %75 = vector.extract_strided_slice %71 {offsets = [32, 0], sizes = [16, 32], strides = [1, 1]} : vector<64x32xf32> to vector<16x32xf32>
    %76 = arith.addf %74, %75 : vector<16x32xf32>
    %77 = vector.extract_strided_slice %71 {offsets = [48, 0], sizes = [16, 32], strides = [1, 1]} : vector<64x32xf32> to vector<16x32xf32>
    %78 = arith.addf %76, %77 : vector<16x32xf32>
    %79 = arith.truncf %78 : vector<16x32xf32> to vector<16x32xbf16>
    %cst_31 = arith.constant dense<0.000000e+00> : vector<16x128xf32>
    %80 = tpu.matmul %79, %35, %cst_31 {dimension_numbers = #tpu.dot_dimension_numbers<[1], [0], [0], [1], [0, 0, 1, 1], [], []>} : vector<16x32xbf16>, vector<32x128xbf16>, vector<16x128xf32> -> vector<16x128xf32>
    %81 = vector.extract_strided_slice %80 {offsets = [0, 0], sizes = [16, 32], strides = [1, 1]} : vector<16x128xf32> to vector<16x32xf32>
    %c5 = arith.constant 5 : index
    %c0_32 = arith.constant 0 : index
    %82 = vector.load %arg2[%c5, %c0_32] : memref<20x128xf32, #tpu.memory_space<vmem>>, vector<1x32xf32>
    %83 = vector.broadcast %82 : vector<1x32xf32> to vector<16x32xf32>
    %84 = arith.addf %81, %83 : vector<16x32xf32>
    %85 = arith.addf %84, %24 : vector<16x32xf32>
    %c6 = arith.constant 6 : index
    %c0_33 = arith.constant 0 : index
    %86 = vector.load %arg2[%c6, %c0_33] : memref<20x128xf32, #tpu.memory_space<vmem>>, vector<1x32xf32>
    %c7 = arith.constant 7 : index
    %c0_34 = arith.constant 0 : index
    %87 = vector.load %arg2[%c7, %c0_34] : memref<20x128xf32, #tpu.memory_space<vmem>>, vector<1x32xf32>
    %cst_35 = arith.constant dense<0.000000e+00> : vector<16xf32>
    %88 = vector.multi_reduction <add>, %85, %cst_35 [1] : vector<16x32xf32> to vector<16xf32>
    %89 = vector.shape_cast %88 : vector<16xf32> to vector<16x1xf32>
    %cst_36 = arith.constant 3.200000e+01 : f32
    %90 = vector.broadcast %cst_36 : f32 to vector<16x1xf32>
    %91 = arith.divf %89, %90 : vector<16x1xf32>
    %92 = vector.broadcast %91 : vector<16x1xf32> to vector<16x32xf32>
    %93 = arith.subf %85, %92 : vector<16x32xf32>
    %94 = arith.mulf %93, %93 : vector<16x32xf32>
    %cst_37 = arith.constant dense<0.000000e+00> : vector<16xf32>
    %95 = vector.multi_reduction <add>, %94, %cst_37 [1] : vector<16x32xf32> to vector<16xf32>
    %96 = vector.shape_cast %95 : vector<16xf32> to vector<16x1xf32>
    %cst_38 = arith.constant 3.200000e+01 : f32
    %97 = vector.broadcast %cst_38 : f32 to vector<16x1xf32>
    %98 = arith.divf %96, %97 : vector<16x1xf32>
    %99 = vector.broadcast %91 : vector<16x1xf32> to vector<16x32xf32>
    %100 = arith.subf %85, %99 : vector<16x32xf32>
    %cst_39 = arith.constant 9.99999996E-13 : f32
    %101 = vector.broadcast %cst_39 : f32 to vector<16x1xf32>
    %102 = arith.addf %98, %101 : vector<16x1xf32>
    %103 = math.rsqrt %102 : vector<16x1xf32>
    %104 = vector.broadcast %103 : vector<16x1xf32> to vector<16x32xf32>
    %105 = arith.mulf %100, %104 : vector<16x32xf32>
    %106 = vector.broadcast %86 : vector<1x32xf32> to vector<16x32xf32>
    %107 = arith.mulf %105, %106 : vector<16x32xf32>
    %108 = vector.broadcast %87 : vector<1x32xf32> to vector<16x32xf32>
    %109 = arith.addf %107, %108 : vector<16x32xf32>
    %110 = arith.truncf %109 : vector<16x32xf32> to vector<16x32xbf16>
    %cst_40 = arith.constant dense<0.000000e+00> : vector<16x128xf32>
    %111 = tpu.matmul %110, %38, %cst_40 {dimension_numbers = #tpu.dot_dimension_numbers<[1], [0], [0], [1], [0, 0, 1, 1], [], []>} : vector<16x32xbf16>, vector<32x128xbf16>, vector<16x128xf32> -> vector<16x128xf32>
    %112 = vector.extract_strided_slice %111 {offsets = [0, 0], sizes = [16, 64], strides = [1, 1]} : vector<16x128xf32> to vector<16x64xf32>
    %c8 = arith.constant 8 : index
    %c0_41 = arith.constant 0 : index
    %113 = vector.load %arg2[%c8, %c0_41] : memref<20x128xf32, #tpu.memory_space<vmem>>, vector<1x64xf32>
    %114 = vector.broadcast %113 : vector<1x64xf32> to vector<16x64xf32>
    %115 = arith.addf %112, %114 : vector<16x64xf32>
    %cst_42 = arith.constant 5.000000e-01 : f32
    %116 = vector.broadcast %cst_42 : f32 to vector<16x64xf32>
    %117 = arith.mulf %116, %115 : vector<16x64xf32>
    %cst_43 = arith.constant 4.471500e-02 : f32
    %118 = vector.broadcast %cst_43 : f32 to vector<16x64xf32>
    %119 = arith.mulf %118, %115 : vector<16x64xf32>
    %120 = arith.mulf %119, %115 : vector<16x64xf32>
    %121 = arith.mulf %120, %115 : vector<16x64xf32>
    %122 = arith.addf %115, %121 : vector<16x64xf32>
    %cst_44 = arith.constant 0.797884583 : f32
    %123 = vector.broadcast %cst_44 : f32 to vector<16x64xf32>
    %124 = arith.mulf %123, %122 : vector<16x64xf32>
    %125 = math.tanh %124 : vector<16x64xf32>
    %cst_45 = arith.constant 1.000000e+00 : f32
    %126 = vector.broadcast %cst_45 : f32 to vector<16x64xf32>
    %127 = arith.addf %126, %125 : vector<16x64xf32>
    %128 = arith.mulf %117, %127 : vector<16x64xf32>
    %129 = arith.truncf %128 : vector<16x64xf32> to vector<16x64xbf16>
    %cst_46 = arith.constant dense<0.000000e+00> : vector<16x128xf32>
    %130 = tpu.matmul %129, %40, %cst_46 {dimension_numbers = #tpu.dot_dimension_numbers<[1], [0], [0], [1], [0, 0, 1, 1], [], []>} : vector<16x64xbf16>, vector<64x128xbf16>, vector<16x128xf32> -> vector<16x128xf32>
    %131 = vector.extract_strided_slice %130 {offsets = [0, 0], sizes = [16, 32], strides = [1, 1]} : vector<16x128xf32> to vector<16x32xf32>
    %c9 = arith.constant 9 : index
    %c0_47 = arith.constant 0 : index
    %132 = vector.load %arg2[%c9, %c0_47] : memref<20x128xf32, #tpu.memory_space<vmem>>, vector<1x32xf32>
    %133 = vector.broadcast %132 : vector<1x32xf32> to vector<16x32xf32>
    %134 = arith.addf %131, %133 : vector<16x32xf32>
    %135 = arith.addf %134, %109 : vector<16x32xf32>
    %c10 = arith.constant 10 : index
    %c0_48 = arith.constant 0 : index
    %136 = vector.load %arg2[%c10, %c0_48] : memref<20x128xf32, #tpu.memory_space<vmem>>, vector<1x32xf32>
    %c11 = arith.constant 11 : index
    %c0_49 = arith.constant 0 : index
    %137 = vector.load %arg2[%c11, %c0_49] : memref<20x128xf32, #tpu.memory_space<vmem>>, vector<1x32xf32>
    %cst_50 = arith.constant dense<0.000000e+00> : vector<16xf32>
    %138 = vector.multi_reduction <add>, %135, %cst_50 [1] : vector<16x32xf32> to vector<16xf32>
    %139 = vector.shape_cast %138 : vector<16xf32> to vector<16x1xf32>
    %cst_51 = arith.constant 3.200000e+01 : f32
    %140 = vector.broadcast %cst_51 : f32 to vector<16x1xf32>
    %141 = arith.divf %139, %140 : vector<16x1xf32>
    %142 = vector.broadcast %141 : vector<16x1xf32> to vector<16x32xf32>
    %143 = arith.subf %135, %142 : vector<16x32xf32>
    %144 = arith.mulf %143, %143 : vector<16x32xf32>
    %cst_52 = arith.constant dense<0.000000e+00> : vector<16xf32>
    %145 = vector.multi_reduction <add>, %144, %cst_52 [1] : vector<16x32xf32> to vector<16xf32>
    %146 = vector.shape_cast %145 : vector<16xf32> to vector<16x1xf32>
    %cst_53 = arith.constant 3.200000e+01 : f32
    %147 = vector.broadcast %cst_53 : f32 to vector<16x1xf32>
    %148 = arith.divf %146, %147 : vector<16x1xf32>
    %149 = vector.broadcast %141 : vector<16x1xf32> to vector<16x32xf32>
    %150 = arith.subf %135, %149 : vector<16x32xf32>
    %cst_54 = arith.constant 9.99999996E-13 : f32
    %151 = vector.broadcast %cst_54 : f32 to vector<16x1xf32>
    %152 = arith.addf %148, %151 : vector<16x1xf32>
    %153 = math.rsqrt %152 : vector<16x1xf32>
    %154 = vector.broadcast %153 : vector<16x1xf32> to vector<16x32xf32>
    %155 = arith.mulf %150, %154 : vector<16x32xf32>
    %156 = vector.broadcast %136 : vector<1x32xf32> to vector<16x32xf32>
    %157 = arith.mulf %155, %156 : vector<16x32xf32>
    %158 = vector.broadcast %137 : vector<1x32xf32> to vector<16x32xf32>
    %159 = arith.addf %157, %158 : vector<16x32xf32>
    %c4_55 = arith.constant 4 : index
    %c0_56 = arith.constant 0 : index
    %c0_57 = arith.constant 0 : index
    %160 = vector.load %arg1[%c4_55, %c0_56, %c0_57] : memref<10x64x128xbf16, #tpu.memory_space<vmem>>, vector<1x64x128xbf16>
    %161 = vector.shape_cast %160 : vector<1x64x128xbf16> to vector<64x128xbf16>
    %162 = vector.extract_strided_slice %161 {offsets = [0, 0], sizes = [32, 128], strides = [1, 1]} : vector<64x128xbf16> to vector<32x128xbf16>
    %c5_58 = arith.constant 5 : index
    %c0_59 = arith.constant 0 : index
    %c0_60 = arith.constant 0 : index
    %163 = vector.load %arg1[%c5_58, %c0_59, %c0_60] : memref<10x64x128xbf16, #tpu.memory_space<vmem>>, vector<1x64x128xbf16>
    %164 = vector.shape_cast %163 : vector<1x64x128xbf16> to vector<64x128xbf16>
    %165 = vector.extract_strided_slice %164 {offsets = [0, 0], sizes = [32, 128], strides = [1, 1]} : vector<64x128xbf16> to vector<32x128xbf16>
    %c6_61 = arith.constant 6 : index
    %c0_62 = arith.constant 0 : index
    %c0_63 = arith.constant 0 : index
    %166 = vector.load %arg1[%c6_61, %c0_62, %c0_63] : memref<10x64x128xbf16, #tpu.memory_space<vmem>>, vector<1x64x128xbf16>
    %167 = vector.shape_cast %166 : vector<1x64x128xbf16> to vector<64x128xbf16>
    %168 = vector.extract_strided_slice %167 {offsets = [0, 0], sizes = [32, 128], strides = [1, 1]} : vector<64x128xbf16> to vector<32x128xbf16>
    %c7_64 = arith.constant 7 : index
    %c0_65 = arith.constant 0 : index
    %c0_66 = arith.constant 0 : index
    %169 = vector.load %arg1[%c7_64, %c0_65, %c0_66] : memref<10x64x128xbf16, #tpu.memory_space<vmem>>, vector<1x64x128xbf16>
    %170 = vector.shape_cast %169 : vector<1x64x128xbf16> to vector<64x128xbf16>
    %171 = arith.truncf %159 : vector<16x32xf32> to vector<16x32xbf16>
    %cst_67 = arith.constant dense<0.000000e+00> : vector<16x128xf32>
    %172 = tpu.matmul %171, %162, %cst_67 {dimension_numbers = #tpu.dot_dimension_numbers<[1], [0], [0], [1], [0, 0, 1, 1], [], []>} : vector<16x32xbf16>, vector<32x128xbf16>, vector<16x128xf32> -> vector<16x128xf32>
    %173 = vector.extract_strided_slice %172 {offsets = [0, 0], sizes = [16, 96], strides = [1, 1]} : vector<16x128xf32> to vector<16x96xf32>
    %c12 = arith.constant 12 : index
    %c0_68 = arith.constant 0 : index
    %174 = vector.load %arg2[%c12, %c0_68] : memref<20x128xf32, #tpu.memory_space<vmem>>, vector<1x96xf32>
    %175 = vector.broadcast %174 : vector<1x96xf32> to vector<16x96xf32>
    %176 = arith.addf %173, %175 : vector<16x96xf32>
    %177 = vector.extract_strided_slice %176 {offsets = [0, 0], sizes = [16, 32], strides = [1, 1]} : vector<16x96xf32> to vector<16x32xf32>
    %178 = vector.extract_strided_slice %176 {offsets = [0, 32], sizes = [16, 32], strides = [1, 1]} : vector<16x96xf32> to vector<16x32xf32>
    %179 = vector.extract_strided_slice %176 {offsets = [0, 64], sizes = [16, 32], strides = [1, 1]} : vector<16x96xf32> to vector<16x32xf32>
    %180 = tpu.concatenate %177, %177, %177, %177 in 0 : vector<16x32xf32>, vector<16x32xf32>, vector<16x32xf32>, vector<16x32xf32> -> vector<64x32xf32>
    %181 = arith.mulf %180, %29 : vector<64x32xf32>
    %182 = arith.truncf %181 : vector<64x32xf32> to vector<64x32xbf16>
    %183 = arith.truncf %178 : vector<16x32xf32> to vector<16x32xbf16>
    %cst_69 = arith.constant dense<0.000000e+00> : vector<64x16xf32>
    %184 = tpu.matmul %182, %183, %cst_69 {dimension_numbers = #tpu.dot_dimension_numbers<[1], [1], [0], [0], [0, 0, 1, 0], [], []>} : vector<64x32xbf16>, vector<16x32xbf16>, vector<64x16xf32> -> vector<64x16xf32>
    %cst_70 = arith.constant 0.353553385 : f32
    %185 = vector.broadcast %cst_70 : f32 to vector<64x16xf32>
    %186 = arith.mulf %184, %185 : vector<64x16xf32>
    %187 = arith.addf %186, %27 : vector<64x16xf32>
    %cst_71 = arith.constant dense<0xFF800000> : vector<64xf32>
    %188 = vector.multi_reduction <maximumf>, %187, %cst_71 [1] : vector<64x16xf32> to vector<64xf32>
    %189 = vector.shape_cast %188 : vector<64xf32> to vector<64x1xf32>
    %190 = vector.broadcast %189 : vector<64x1xf32> to vector<64x16xf32>
    %191 = arith.subf %187, %190 : vector<64x16xf32>
    %192 = math.exp %191 : vector<64x16xf32>
    %cst_72 = arith.constant dense<0.000000e+00> : vector<64xf32>
    %193 = vector.multi_reduction <add>, %192, %cst_72 [1] : vector<64x16xf32> to vector<64xf32>
    %194 = vector.shape_cast %193 : vector<64xf32> to vector<64x1xf32>
    %195 = tpu.reciprocal %194 {approx = true} : vector<64x1xf32> -> vector<64x1xf32>
    %196 = vector.broadcast %195 : vector<64x1xf32> to vector<64x16xf32>
    %197 = arith.mulf %192, %196 : vector<64x16xf32>
    %198 = arith.truncf %197 : vector<64x16xf32> to vector<64x16xbf16>
    %199 = arith.truncf %179 : vector<16x32xf32> to vector<16x32xbf16>
    %cst_73 = arith.constant dense<0.000000e+00> : vector<64x32xf32>
    %200 = tpu.matmul %198, %199, %cst_73 {dimension_numbers = #tpu.dot_dimension_numbers<[1], [0], [0], [1], [0, 0, 1, 1], [], []>} : vector<64x16xbf16>, vector<16x32xbf16>, vector<64x32xf32> -> vector<64x32xf32>
    %201 = arith.mulf %200, %29 : vector<64x32xf32>
    %202 = vector.extract_strided_slice %201 {offsets = [0, 0], sizes = [16, 32], strides = [1, 1]} : vector<64x32xf32> to vector<16x32xf32>
    %203 = vector.extract_strided_slice %201 {offsets = [16, 0], sizes = [16, 32], strides = [1, 1]} : vector<64x32xf32> to vector<16x32xf32>
    %204 = arith.addf %202, %203 : vector<16x32xf32>
    %205 = vector.extract_strided_slice %201 {offsets = [32, 0], sizes = [16, 32], strides = [1, 1]} : vector<64x32xf32> to vector<16x32xf32>
    %206 = arith.addf %204, %205 : vector<16x32xf32>
    %207 = vector.extract_strided_slice %201 {offsets = [48, 0], sizes = [16, 32], strides = [1, 1]} : vector<64x32xf32> to vector<16x32xf32>
    %208 = arith.addf %206, %207 : vector<16x32xf32>
    %209 = arith.truncf %208 : vector<16x32xf32> to vector<16x32xbf16>
    %cst_74 = arith.constant dense<0.000000e+00> : vector<16x128xf32>
    %210 = tpu.matmul %209, %165, %cst_74 {dimension_numbers = #tpu.dot_dimension_numbers<[1], [0], [0], [1], [0, 0, 1, 1], [], []>} : vector<16x32xbf16>, vector<32x128xbf16>, vector<16x128xf32> -> vector<16x128xf32>
    %211 = vector.extract_strided_slice %210 {offsets = [0, 0], sizes = [16, 32], strides = [1, 1]} : vector<16x128xf32> to vector<16x32xf32>
    %c13 = arith.constant 13 : index
    %c0_75 = arith.constant 0 : index
    %212 = vector.load %arg2[%c13, %c0_75] : memref<20x128xf32, #tpu.memory_space<vmem>>, vector<1x32xf32>
    %213 = vector.broadcast %212 : vector<1x32xf32> to vector<16x32xf32>
    %214 = arith.addf %211, %213 : vector<16x32xf32>
    %215 = arith.addf %214, %159 : vector<16x32xf32>
    %c14 = arith.constant 14 : index
    %c0_76 = arith.constant 0 : index
    %216 = vector.load %arg2[%c14, %c0_76] : memref<20x128xf32, #tpu.memory_space<vmem>>, vector<1x32xf32>
    %c15 = arith.constant 15 : index
    %c0_77 = arith.constant 0 : index
    %217 = vector.load %arg2[%c15, %c0_77] : memref<20x128xf32, #tpu.memory_space<vmem>>, vector<1x32xf32>
    %cst_78 = arith.constant dense<0.000000e+00> : vector<16xf32>
    %218 = vector.multi_reduction <add>, %215, %cst_78 [1] : vector<16x32xf32> to vector<16xf32>
    %219 = vector.shape_cast %218 : vector<16xf32> to vector<16x1xf32>
    %cst_79 = arith.constant 3.200000e+01 : f32
    %220 = vector.broadcast %cst_79 : f32 to vector<16x1xf32>
    %221 = arith.divf %219, %220 : vector<16x1xf32>
    %222 = vector.broadcast %221 : vector<16x1xf32> to vector<16x32xf32>
    %223 = arith.subf %215, %222 : vector<16x32xf32>
    %224 = arith.mulf %223, %223 : vector<16x32xf32>
    %cst_80 = arith.constant dense<0.000000e+00> : vector<16xf32>
    %225 = vector.multi_reduction <add>, %224, %cst_80 [1] : vector<16x32xf32> to vector<16xf32>
    %226 = vector.shape_cast %225 : vector<16xf32> to vector<16x1xf32>
    %cst_81 = arith.constant 3.200000e+01 : f32
    %227 = vector.broadcast %cst_81 : f32 to vector<16x1xf32>
    %228 = arith.divf %226, %227 : vector<16x1xf32>
    %229 = vector.broadcast %221 : vector<16x1xf32> to vector<16x32xf32>
    %230 = arith.subf %215, %229 : vector<16x32xf32>
    %cst_82 = arith.constant 9.99999996E-13 : f32
    %231 = vector.broadcast %cst_82 : f32 to vector<16x1xf32>
    %232 = arith.addf %228, %231 : vector<16x1xf32>
    %233 = math.rsqrt %232 : vector<16x1xf32>
    %234 = vector.broadcast %233 : vector<16x1xf32> to vector<16x32xf32>
    %235 = arith.mulf %230, %234 : vector<16x32xf32>
    %236 = vector.broadcast %216 : vector<1x32xf32> to vector<16x32xf32>
    %237 = arith.mulf %235, %236 : vector<16x32xf32>
    %238 = vector.broadcast %217 : vector<1x32xf32> to vector<16x32xf32>
    %239 = arith.addf %237, %238 : vector<16x32xf32>
    %240 = arith.truncf %239 : vector<16x32xf32> to vector<16x32xbf16>
    %cst_83 = arith.constant dense<0.000000e+00> : vector<16x128xf32>
    %241 = tpu.matmul %240, %168, %cst_83 {dimension_numbers = #tpu.dot_dimension_numbers<[1], [0], [0], [1], [0, 0, 1, 1], [], []>} : vector<16x32xbf16>, vector<32x128xbf16>, vector<16x128xf32> -> vector<16x128xf32>
    %242 = vector.extract_strided_slice %241 {offsets = [0, 0], sizes = [16, 64], strides = [1, 1]} : vector<16x128xf32> to vector<16x64xf32>
    %c16 = arith.constant 16 : index
    %c0_84 = arith.constant 0 : index
    %243 = vector.load %arg2[%c16, %c0_84] : memref<20x128xf32, #tpu.memory_space<vmem>>, vector<1x64xf32>
    %244 = vector.broadcast %243 : vector<1x64xf32> to vector<16x64xf32>
    %245 = arith.addf %242, %244 : vector<16x64xf32>
    %cst_85 = arith.constant 5.000000e-01 : f32
    %246 = vector.broadcast %cst_85 : f32 to vector<16x64xf32>
    %247 = arith.mulf %246, %245 : vector<16x64xf32>
    %cst_86 = arith.constant 4.471500e-02 : f32
    %248 = vector.broadcast %cst_86 : f32 to vector<16x64xf32>
    %249 = arith.mulf %248, %245 : vector<16x64xf32>
    %250 = arith.mulf %249, %245 : vector<16x64xf32>
    %251 = arith.mulf %250, %245 : vector<16x64xf32>
    %252 = arith.addf %245, %251 : vector<16x64xf32>
    %cst_87 = arith.constant 0.797884583 : f32
    %253 = vector.broadcast %cst_87 : f32 to vector<16x64xf32>
    %254 = arith.mulf %253, %252 : vector<16x64xf32>
    %255 = math.tanh %254 : vector<16x64xf32>
    %cst_88 = arith.constant 1.000000e+00 : f32
    %256 = vector.broadcast %cst_88 : f32 to vector<16x64xf32>
    %257 = arith.addf %256, %255 : vector<16x64xf32>
    %258 = arith.mulf %247, %257 : vector<16x64xf32>
    %259 = arith.truncf %258 : vector<16x64xf32> to vector<16x64xbf16>
    %cst_89 = arith.constant dense<0.000000e+00> : vector<16x128xf32>
    %260 = tpu.matmul %259, %170, %cst_89 {dimension_numbers = #tpu.dot_dimension_numbers<[1], [0], [0], [1], [0, 0, 1, 1], [], []>} : vector<16x64xbf16>, vector<64x128xbf16>, vector<16x128xf32> -> vector<16x128xf32>
    %261 = vector.extract_strided_slice %260 {offsets = [0, 0], sizes = [16, 32], strides = [1, 1]} : vector<16x128xf32> to vector<16x32xf32>
    %c17 = arith.constant 17 : index
    %c0_90 = arith.constant 0 : index
    %262 = vector.load %arg2[%c17, %c0_90] : memref<20x128xf32, #tpu.memory_space<vmem>>, vector<1x32xf32>
    %263 = vector.broadcast %262 : vector<1x32xf32> to vector<16x32xf32>
    %264 = arith.addf %261, %263 : vector<16x32xf32>
    %265 = arith.addf %264, %239 : vector<16x32xf32>
    %c18 = arith.constant 18 : index
    %c0_91 = arith.constant 0 : index
    %266 = vector.load %arg2[%c18, %c0_91] : memref<20x128xf32, #tpu.memory_space<vmem>>, vector<1x32xf32>
    %c19 = arith.constant 19 : index
    %c0_92 = arith.constant 0 : index
    %267 = vector.load %arg2[%c19, %c0_92] : memref<20x128xf32, #tpu.memory_space<vmem>>, vector<1x32xf32>
    %cst_93 = arith.constant dense<0.000000e+00> : vector<16xf32>
    %268 = vector.multi_reduction <add>, %265, %cst_93 [1] : vector<16x32xf32> to vector<16xf32>
    %269 = vector.shape_cast %268 : vector<16xf32> to vector<16x1xf32>
    %cst_94 = arith.constant 3.200000e+01 : f32
    %270 = vector.broadcast %cst_94 : f32 to vector<16x1xf32>
    %271 = arith.divf %269, %270 : vector<16x1xf32>
    %272 = vector.broadcast %271 : vector<16x1xf32> to vector<16x32xf32>
    %273 = arith.subf %265, %272 : vector<16x32xf32>
    %274 = arith.mulf %273, %273 : vector<16x32xf32>
    %cst_95 = arith.constant dense<0.000000e+00> : vector<16xf32>
    %275 = vector.multi_reduction <add>, %274, %cst_95 [1] : vector<16x32xf32> to vector<16xf32>
    %276 = vector.shape_cast %275 : vector<16xf32> to vector<16x1xf32>
    %cst_96 = arith.constant 3.200000e+01 : f32
    %277 = vector.broadcast %cst_96 : f32 to vector<16x1xf32>
    %278 = arith.divf %276, %277 : vector<16x1xf32>
    %279 = vector.broadcast %271 : vector<16x1xf32> to vector<16x32xf32>
    %280 = arith.subf %265, %279 : vector<16x32xf32>
    %cst_97 = arith.constant 9.99999996E-13 : f32
    %281 = vector.broadcast %cst_97 : f32 to vector<16x1xf32>
    %282 = arith.addf %278, %281 : vector<16x1xf32>
    %283 = math.rsqrt %282 : vector<16x1xf32>
    %284 = vector.broadcast %283 : vector<16x1xf32> to vector<16x32xf32>
    %285 = arith.mulf %280, %284 : vector<16x32xf32>
    %286 = vector.broadcast %266 : vector<1x32xf32> to vector<16x32xf32>
    %287 = arith.mulf %285, %286 : vector<16x32xf32>
    %288 = vector.broadcast %267 : vector<1x32xf32> to vector<16x32xf32>
    %289 = arith.addf %287, %288 : vector<16x32xf32>
    %c0_98 = arith.constant 0 : index
    %c0_99 = arith.constant 0 : index
    %290 = vector.load %arg5[%c0_98, %c0_99] : memref<16x32xf32, #tpu.memory_space<vmem>>, vector<16x32xf32>
    tpu.vector_store %arg5[%c0_98, %c0_99], %289 {strides = array<i32>} : memref<16x32xf32, #tpu.memory_space<vmem>>, vector<16x32xf32>,
    %c0_100 = arith.constant 0 : index
    %c0_101 = arith.constant 0 : index
    %291 = tpu.strided_load %arg5[%c0_100, %c0_101] {strides = array<i32: 8, 1>} : memref<16x32xf32, #tpu.memory_space<vmem>>, vector<2x32xf32>
    %292 = arith.truncf %291 : vector<2x32xf32> to vector<2x32xbf16>
    %c8_102 = arith.constant 8 : index
    %c0_103 = arith.constant 0 : index
    %c0_104 = arith.constant 0 : index
    %293 = vector.load %arg1[%c8_102, %c0_103, %c0_104] : memref<10x64x128xbf16, #tpu.memory_space<vmem>>, vector<1x64x128xbf16>
    %294 = vector.shape_cast %293 : vector<1x64x128xbf16> to vector<64x128xbf16>
    %295 = vector.extract_strided_slice %294 {offsets = [0, 0], sizes = [32, 128], strides = [1, 1]} : vector<64x128xbf16> to vector<32x128xbf16>
    %cst_105 = arith.constant dense<0.000000e+00> : vector<2x128xf32>
    %296 = tpu.matmul %292, %295, %cst_105 {dimension_numbers = #tpu.dot_dimension_numbers<[1], [0], [0], [1], [0, 0, 1, 1], [], []>} : vector<2x32xbf16>, vector<32x128xbf16>, vector<2x128xf32> -> vector<2x128xf32>
    %297 = vector.extract_strided_slice %296 {offsets = [0, 0], sizes = [2, 32], strides = [1, 1]} : vector<2x128xf32> to vector<2x32xf32>
    %c2_106 = arith.constant 2 : index
    %c0_107 = arith.constant 0 : index
    %298 = vector.load %arg2[%c2_106, %c0_107] : memref<20x128xf32, #tpu.memory_space<vmem>>, vector<1x32xf32>
    %299 = vector.broadcast %298 : vector<1x32xf32> to vector<2x32xf32>
    %300 = arith.addf %297, %299 : vector<2x32xf32>
    %301 = math.tanh %300 : vector<2x32xf32>
    %302 = arith.truncf %301 : vector<2x32xf32> to vector<2x32xbf16>
    %c9_108 = arith.constant 9 : index
    %c0_109 = arith.constant 0 : index
    %c0_110 = arith.constant 0 : index
    %303 = vector.load %arg1[%c9_108, %c0_109, %c0_110] : memref<10x64x128xbf16, #tpu.memory_space<vmem>>, vector<1x64x128xbf16>
    %304 = vector.shape_cast %303 : vector<1x64x128xbf16> to vector<64x128xbf16>
    %305 = vector.extract_strided_slice %304 {offsets = [0, 0], sizes = [32, 128], strides = [1, 1]} : vector<64x128xbf16> to vector<32x128xbf16>
    %cst_111 = arith.constant dense<0.000000e+00> : vector<2x128xf32>
    %306 = tpu.matmul %302, %305, %cst_111 {dimension_numbers = #tpu.dot_dimension_numbers<[1], [0], [0], [1], [0, 0, 1, 1], [], []>} : vector<2x32xbf16>, vector<32x128xbf16>, vector<2x128xf32> -> vector<2x128xf32>
    %307 = vector.extract_strided_slice %306 {offsets = [0, 0], sizes = [2, 16], strides = [1, 1]} : vector<2x128xf32> to vector<2x16xf32>
    %c3_112 = arith.constant 3 : index
    %c0_113 = arith.constant 0 : index
    %308 = vector.load %arg2[%c3_112, %c0_113] : memref<20x128xf32, #tpu.memory_space<vmem>>, vector<1x16xf32>
    %309 = vector.broadcast %308 : vector<1x16xf32> to vector<2x16xf32>
    %310 = arith.addf %307, %309 : vector<2x16xf32>
    %c0_114 = arith.constant 0 : index
    %c0_115 = arith.constant 0 : index
    %311 = vector.load %arg4[%c0_114, %c0_115] : memref<2x16xf32, #tpu.memory_space<vmem>>, vector<2x16xf32>
    tpu.vector_store %arg4[%c0_114, %c0_115], %310 {strides = array<i32>} : memref<2x16xf32, #tpu.memory_space<vmem>>, vector<2x16xf32>,
    return
  }
}

</mosaic_0001>

<llo_original>
// kernel: bert_encoder_forward.1
$region0: #{bert_encoder_forward.1}
  #allocation0 [shape = 'u32[]', space=smem, size = 0x4, offset = 0x4, fixed_abs, tag = 'smem constant byte address 0x4 - core index']
  #allocation1 [shape = 'u32[144,128]{1,0:T(1,128)}', space=vmem, size = 0x12000, scoped, tag = 'internal scratch']
  #allocation2 [shape = 'f32[16,32]{1,0:T(8,128)}', space=vmem, size = 0x2000, scoped, tag = 'scratch operand']
  %s0 = inlined_call_operand.vmem [shape: f32[16,32], index: 0, kind: input, shape index: {}]
  %s1 = inlined_call_operand.vmem [shape: bf16[10,64,128], index: 1, kind: input, shape index: {}]
  %s2 = inlined_call_operand.vmem [shape: f32[20,128], index: 2, kind: input, shape index: {}]
  %s3 = inlined_call_operand.vmem [shape: f32[2,64,32], index: 3, kind: input, shape index: {}]
  %s4 = inlined_call_operand.hbm [shape: f32[2,16], index: 4, kind: output, shape index: {}]
  %s5 = sld [smem:[#allocation0]]
  $region26: #{bert_encoder_forward.1} parent=0
    _
  %s7 = ssub.s32 1, %s5
  %s8 = scalar_select 0, %s7, %s5
  $region1: #{bert_encoder_forward.1} parent=0
    #allocation3 [shape = 'u8[1024]{0}', space=vmem, size = 0x400, scoped, tag = 'output window, operand 0, single buffered']
    #allocation4 [shape = 's32[1]{0}', space=sflag, size = 0x4, scoped, tag = 'scoped memory for bert_encoder_forward.1']
    %9 = vsyncpa [#allocation4], 0
    // Predicated region
    $region2: #{bert_encoder_forward.1} parent=1 // pred_check
      _
    $region3: #{bert_encoder_forward.1} parent=1 // pred_check_branch
      %11 = sbr.rel (0) target = $region5
    $region4: #{bert_encoder_forward.1} parent=1 // pred_region
      _
    $region5: #{bert_encoder_forward.1} parent=1 // pred_fallthru
      _
    // Predicated region
    $region6: #{bert_encoder_forward.1} parent=1 // pred_check
      _
    $region7: #{bert_encoder_forward.1} parent=1 // pred_check_branch
      %13 = sbr.rel (0) target = $region9
    $region8: #{bert_encoder_forward.1} parent=1 // pred_region
      _
    $region9: #{bert_encoder_forward.1} parent=1 // pred_fallthru
      _
    // Predicated region
    $region10: #{bert_encoder_forward.1} parent=1 // pred_check
      _
    $region11: #{bert_encoder_forward.1} parent=1 // pred_check_branch
      %15 = sbr.rel (0) target = $region13
    $region12: #{bert_encoder_forward.1} parent=1 // pred_region
      _
    $region13: #{bert_encoder_forward.1} parent=1 // pred_fallthru
      _
    // Predicated region
    $region14: #{bert_encoder_forward.1} parent=1 // pred_check
      _
    $region15: #{bert_encoder_forward.1} parent=1 // pred_check_branch
      %17 = sbr.rel (0) target = $region17
    $region16: #{bert_encoder_forward.1} parent=1 // pred_region
      _
    $region17: #{bert_encoder_forward.1} parent=1 // pred_fallthru
      _
    %v19 = vld [vmem:[%s0] sm:$0xff]
    %v20 = vld [vmem:[%s0 + $0x8] sm:$0xff]
    %v21 = vld [vmem:[%s2] sm:$0x1]
    %v22 = vld [vmem:[%s2 + $0x1] sm:$0x1]
    %vm23 = vcmask 261120
    %v24 = vsel %vm23, %v19, 0.0
    %25 = vadd.xlane.f32.xlu0 %v24
    %v26 = vpop.xlane.xlu0 %25
    %v27 = vsel %vm23, %v20, 0.0
    %28 = vadd.xlane.f32.xlu0 %v27
    %v29 = vpop.xlane.xlu0 %28
    %v30 = vrcp.pop 32.0
    %v31 = vmul.f32 %v26, %v30
    %v32 = vmul.f32 %v29, %v30
    %v33 = vsub.f32 %v19, %v31
    %v34 = vsub.f32 %v20, %v32
    %v35 = vmul.f32 %v33, %v33
    %v36 = vmul.f32 %v34, %v34
    %v37 = vsel %vm23, %v35, 0.0
    %38 = vadd.xlane.f32.xlu0 %v37
    %v39 = vpop.xlane.xlu0 %38
    %v40 = vsel %vm23, %v36, 0.0
    %41 = vadd.xlane.f32.xlu0 %v40
    %v42 = vpop.xlane.xlu0 %41
    %v43 = vmul.f32 %v39, %v30
    %v44 = vmul.f32 %v42, %v30
    %v45 = vadd.f32 %v43, 1e-12
    %v46 = vadd.f32 %v44, 1e-12
    %v47 = vrsqrt.pop %v45
    %v48 = vrsqrt.pop %v46
    %v49 = vmul.f32 %v33, %v47
    %v50 = vmul.f32 %v34, %v48
    %v51 = vlaneseq
    %v52 = vshrl.u32 %v51, 7
    %v53 = vsub.s32 0, %v52
    %v54 = vrot.slane %v21, %v53
    %v55 = vmul.f32 %v49, %v54
    %v56 = vmul.f32 %v50, %v54
    %v57 = vlaneseq
    %v58 = vshrl.u32 %v57, 7
    %v59 = vsub.s32 0, %v58
    %v60 = vrot.slane %v22, %v59
    %v61 = vadd.f32 %v55, %v60
    %v62 = vadd.f32 %v56, %v60
    %v63 = vld [vmem:[%s3] sm:$0xff]
    %v64 = vld [vmem:[%s3 + $0x8] sm:$0xff]
    %v65 = vld [vmem:[%s3 + $0x10] sm:$0xff]
    %v66 = vld [vmem:[%s3 + $0x18] sm:$0xff]
    %v67 = vld [vmem:[%s3 + $0x20] sm:$0xff]
    %v68 = vld [vmem:[%s3 + $0x28] sm:$0xff]
    %v69 = vld [vmem:[%s3 + $0x30] sm:$0xff]
    %v70 = vld [vmem:[%s3 + $0x38] sm:$0xff]
    %s71 = scalar_lea.vmem %s3, 64
    %v72 = vld [vmem:[%s71] sm:$0xff]
    %v73 = vld [vmem:[%s71 + $0x8] sm:$0xff]
    %v74 = vld [vmem:[%s71 + $0x10] sm:$0xff]
    %v75 = vld [vmem:[%s71 + $0x18] sm:$0xff]
    %v76 = vld [vmem:[%s71 + $0x20] sm:$0xff]
    %v77 = vld [vmem:[%s71 + $0x28] sm:$0xff]
    %v78 = vld [vmem:[%s71 + $0x30] sm:$0xff]
    %v79 = vld [vmem:[%s71 + $0x38] sm:$0xff]
    %v80 = vld [vmem:[%s1] sm:$0xf]
    %v81 = vld [vmem:[%s1 + $0x4] sm:$0xf]
    %v82 = vld [vmem:[%s1 + $0x8] sm:$0xf]
    %v83 = vld [vmem:[%s1 + $0xc] sm:$0xf]
    %s84 = scalar_lea.vmem %s1, 32
    %v85 = vld [vmem:[%s84] sm:$0xf]
    %v86 = vld [vmem:[%s84 + $0x4] sm:$0xf]
    %v87 = vld [vmem:[%s84 + $0x8] sm:$0xf]
    %v88 = vld [vmem:[%s84 + $0xc] sm:$0xf]
    %s89 = scalar_lea.vmem %s1, 64
    %v90 = vld [vmem:[%s89] sm:$0xf]
    %v91 = vld [vmem:[%s89 + $0x4] sm:$0xf]
    %v92 = vld [vmem:[%s89 + $0x8] sm:$0xf]
    %v93 = vld [vmem:[%s89 + $0xc] sm:$0xf]
    %s94 = scalar_lea.vmem %s1, 96
    %v95 = vld [vmem:[%s94] sm:$0xf]
    %v96 = vld [vmem:[%s94 + $0x4] sm:$0xf]
    %v97 = vld [vmem:[%s94 + $0x8] sm:$0xf]
    %v98 = vld [vmem:[%s94 + $0xc] sm:$0xf]
    %v99 = vld [vmem:[%s94 + $0x10] sm:$0xf]
    %v100 = vld [vmem:[%s94 + $0x14] sm:$0xf]
    %v101 = vld [vmem:[%s94 + $0x18] sm:$0xf]
    %v102 = vld [vmem:[%s94 + $0x1c] sm:$0xf]
    %v103 = vpack.c.bf16 %v62, %v61
    %v108 = vunpack.c.l.b16 %v80
    %v109 = vunpack.c.l.b16 %v81
    %v110 = vunpack.c.l.b16 %v82
    %v111 = vunpack.c.l.b16 %v83
    %v112 = vpack.c.b16 %v109, %v108
    %v113 = vpack.c.b16 %v111, %v110
    %v117 = vsel %vm23, %v103, 0
    %119 = vmatprep.subr.bf16.mxu0 0
    %120 = vmatpush1.bf16.msra.mxu0 0
    %121 = vmatprep.subr.bf16.mxu0 0
    %122 = vmatpush1.bf16.msra.mxu0 0
    %123 = vmatprep.subr.bf16.mxu0 0
    %124 = vmatpush1.bf16.msra.mxu0 0
    %125 = vmatprep.subr.bf16.mxu0 0
    %126 = vmatpush1.bf16.msra.mxu0 0
    %127 = vmatprep.subr.bf16.mxu0 0
    %128 = vmatpush1.bf16.msra.mxu0 0
    %129 = vmatprep.subr.bf16.mxu0 0
    %130 = vmatpush1.bf16.msra.mxu0 0
    %131 = vmatprep.subr.bf16.mxu0 0
    %132 = vmatpush1.bf16.msra.mxu0 %v113
    %133 = vmatprep.subr.bf16.mxu0 0
    %134 = vmatpush1.bf16.msra.mxu0 %v112
    %135 = vmatprep.subr.bf16.mxu0 0
    %136 = vmatpush2.bf16.msra.mxu0 0
    %137 = vmatprep.subr.bf16.mxu0 0
    %138 = vmatpush2.bf16.msra.mxu0 0
    %139 = vmatprep.subr.bf16.mxu0 0
    %140 = vmatpush2.bf16.msra.mxu0 0
    %141 = vmatprep.subr.bf16.mxu0 0
    %142 = vmatpush2.bf16.msra.mxu0 0
    %143 = vmatprep.subr.bf16.mxu0 0
    %144 = vmatpush2.bf16.msra.mxu0 0
    %145 = vmatprep.subr.bf16.mxu0 0
    %146 = vmatpush2.bf16.msra.mxu0 0
    %147 = vmatprep.subr.bf16.mxu0 0
    %148 = vmatpush2.bf16.msra.mxu0 0
    %149 = vmatprep.subr.bf16.mxu0 0
    %150 = vmatpush2.bf16.msra.mxu0 0
    %151 = vmatprep.mubr.bf16.mxu0 0
    %152 = vmatmul.mubr.bf16.gmra.mxu0 %v117
    %v153 = vpop.f32.mrf.mxu0
    %v154 = vadd.f32 0.0, %v153
    %v155 = vpop.f32.mrf.mxu0
    %v156 = vpop.f32.mrf.mxu0
    %v157 = vadd.f32 0.0, %v156
    %v158 = vpop.f32.mrf.mxu0
    %159 = vdwg.mxu0
    %v160 = vld [vmem:[%s2 + $0x4] sm:$0x1]
    %v161 = vlaneseq
    %v162 = vshrl.u32 %v161, 7
    %v163 = vsub.s32 0, %v162
    %v164 = vrot.slane %v160, %v163
    %v165 = vadd.f32 %v154, %v164
    %v166 = vadd.f32 %v157, %v164
    %v167 = vmul.f32 %v165, %v72
    %v168 = vmul.f32 %v166, %v73
    %v169 = vmul.f32 %v165, %v74
    %v170 = vmul.f32 %v166, %v75
    %v171 = vmul.f32 %v165, %v76
    %v172 = vmul.f32 %v166, %v77
    %v173 = vmul.f32 %v165, %v78
    %v174 = vmul.f32 %v166, %v79
    %v175 = vpack.c.bf16 %v168, %v167
    %v176 = vpack.c.bf16 %v170, %v169
    %v177 = vpack.c.bf16 %v172, %v171
    %v178 = vpack.c.bf16 %v174, %v173
    %v179 = vpack.c.bf16 %v166, %v165
    %181 = vrot.lane.b32.xlu0 %v179, 96
    %v182 = vpop.permute.xlu0 %181
    %v184 = vsel %vm23, %v175, 0
    %v187 = vsel %vm23, %v176, 0
    %v190 = vsel %vm23, %v177, 0
    %v193 = vsel %vm23, %v178, 0
    %v196 = vsel %vm23, %v182, 0
    %198 = vmatprep.subr.bf16.mxu0 0
    %199 = vmatpush1.bf16.xpose.msra.mxu0 0
    %200 = vmatprep.subr.bf16.mxu0 0
    %201 = vmatpush1.bf16.xpose.msra.mxu0 0
    %202 = vmatprep.subr.bf16.mxu0 0
    %203 = vmatpush1.bf16.xpose.msra.mxu0 0
    %204 = vmatprep.subr.bf16.mxu0 0
    %205 = vmatpush1.bf16.xpose.msra.mxu0 0
    %206 = vmatprep.subr.bf16.mxu0 0
    %207 = vmatpush1.bf16.xpose.msra.mxu0 0
    %208 = vmatprep.subr.bf16.mxu0 0
    %209 = vmatpush1.bf16.xpose.msra.mxu0 0
    %210 = vmatprep.subr.bf16.mxu0 0
    %211 = vmatpush1.bf16.xpose.msra.mxu0 0
    %212 = vmatprep.subr.bf16.mxu0 0
    %213 = vmatpush1.bf16.xpose.msra.mxu0 %v196
    %214 = vmatprep.subr.bf16.mxu0 0
    %215 = vmatpush2.bf16.xpose.msra.mxu0 0
    %216 = vmatprep.subr.bf16.mxu0 0
    %217 = vmatpush2.bf16.xpose.msra.mxu0 0
    %218 = vmatprep.subr.bf16.mxu0 0
    %219 = vmatpush2.bf16.xpose.msra.mxu0 0
    %220 = vmatprep.subr.bf16.mxu0 0
    %221 = vmatpush2.bf16.xpose.msra.mxu0 0
    %222 = vmatprep.subr.bf16.mxu0 0
    %223 = vmatpush2.bf16.xpose.msra.mxu0 0
    %224 = vmatprep.subr.bf16.mxu0 0
    %225 = vmatpush2.bf16.xpose.msra.mxu0 0
    %226 = vmatprep.subr.bf16.mxu0 0
    %227 = vmatpush2.bf16.xpose.msra.mxu0 0
    %228 = vmatprep.subr.bf16.mxu0 0
    %229 = vmatpush2.bf16.xpose.msra.mxu0 0
    %230 = vmatprep.mubr.bf16.mxu0 0
    %231 = vmatmul.mubr.bf16.gmra.mxu0 %v184
    %v232 = vpop.f32.mrf.mxu0
    %v233 = vadd.f32 0.0, %v232
    %v234 = vpop.f32.mrf.mxu0
    %v235 = vpop.f32.mrf.mxu0
    %v236 = vadd.f32 0.0, %v235
    %v237 = vpop.f32.mrf.mxu0
    %238 = vmatprep.mubr.bf16.mxu0 0
    %239 = vmatmul.mubr.bf16.gmra.mxu0 %v187
    %v240 = vpop.f32.mrf.mxu0
    %v241 = vadd.f32 0.0, %v240
    %v242 = vpop.f32.mrf.mxu0
    %v243 = vpop.f32.mrf.mxu0
    %v244 = vadd.f32 0.0, %v243
    %v245 = vpop.f32.mrf.mxu0
    %246 = vmatprep.mubr.bf16.mxu0 0
    %247 = vmatmul.mubr.bf16.gmra.mxu0 %v190
    %v248 = vpop.f32.mrf.mxu0
    %v249 = vadd.f32 0.0, %v248
    %v250 = vpop.f32.mrf.mxu0
    %v251 = vpop.f32.mrf.mxu0
    %v252 = vadd.f32 0.0, %v251
    %v253 = vpop.f32.mrf.mxu0
    %254 = vmatprep.mubr.bf16.mxu0 0
    %255 = vmatmul.mubr.bf16.gmra.mxu0 %v193
    %v256 = vpop.f32.mrf.mxu0
    %v257 = vadd.f32 0.0, %v256
    %v258 = vpop.f32.mrf.mxu0
    %v259 = vpop.f32.mrf.mxu0
    %v260 = vadd.f32 0.0, %v259
    %v261 = vpop.f32.mrf.mxu0
    %262 = vdwg.mxu0
    %v263 = vmul.f32 %v233, 0.35355338
    %v264 = vmul.f32 %v236, 0.35355338
    %v265 = vmul.f32 %v241, 0.35355338
    %v266 = vmul.f32 %v244, 0.35355338
    %v267 = vmul.f32 %v249, 0.35355338
    %v268 = vmul.f32 %v252, 0.35355338
    %v269 = vmul.f32 %v257, 0.35355338
    %v270 = vmul.f32 %v260, 0.35355338
    %v271 = vadd.f32 %v263, %v63
    %v272 = vadd.f32 %v264, %v64
    %v273 = vadd.f32 %v265, %v65
    %v274 = vadd.f32 %v266, %v66
    %v275 = vadd.f32 %v267, %v67
    %v276 = vadd.f32 %v268, %v68
    %v277 = vadd.f32 %v269, %v69
    %v278 = vadd.f32 %v270, %v70
    %vm279 = vcmask 130048
    %v280 = vsel %vm279, %v271, -inf
    %281 = vmax.xlane.f32.xlu0 %v280
    %v282 = vpop.xlane.xlu0 %281
    %v283 = vsel %vm279, %v272, -inf
    %284 = vmax.xlane.f32.xlu0 %v283
    %v285 = vpop.xlane.xlu0 %284
    %v286 = vsel %vm279, %v273, -inf
    %287 = vmax.xlane.f32.xlu0 %v286
    %v288 = vpop.xlane.xlu0 %287
    %v289 = vsel %vm279, %v274, -inf
    %290 = vmax.xlane.f32.xlu0 %v289
    %v291 = vpop.xlane.xlu0 %290
    %v292 = vsel %vm279, %v275, -inf
    %293 = vmax.xlane.f32.xlu0 %v292
    %v294 = vpop.xlane.xlu0 %293
    %v295 = vsel %vm279, %v276, -inf
    %296 = vmax.xlane.f32.xlu0 %v295
    %v297 = vpop.xlane.xlu0 %296
    %v298 = vsel %vm279, %v277, -inf
    %299 = vmax.xlane.f32.xlu0 %v298
    %v300 = vpop.xlane.xlu0 %299
    %v301 = vsel %vm279, %v278, -inf
    %302 = vmax.xlane.f32.xlu0 %v301
    %v303 = vpop.xlane.xlu0 %302
    %v304 = vsub.f32 %v271, %v282
    %v305 = vsub.f32 %v272, %v285
    %v306 = vsub.f32 %v273, %v288
    %v307 = vsub.f32 %v274, %v291
    %v308 = vsub.f32 %v275, %v294
    %v309 = vsub.f32 %v276, %v297
    %v310 = vsub.f32 %v277, %v300
    %v311 = vsub.f32 %v278, %v303
    %v312 = vmul.f32 %v304, 1.442695
    %v313 = vpow.pop %v312
    %v314 = vmul.f32 %v305, 1.442695
    %v315 = vpow.pop %v314
    %v316 = vmul.f32 %v306, 1.442695
    %v317 = vpow.pop %v316
    %v318 = vmul.f32 %v307, 1.442695
    %v319 = vpow.pop %v318
    %v320 = vmul.f32 %v308, 1.442695
    %v321 = vpow.pop %v320
    %v322 = vmul.f32 %v309, 1.442695
    %v323 = vpow.pop %v322
    %v324 = vmul.f32 %v310, 1.442695
    %v325 = vpow.pop %v324
    %v326 = vmul.f32 %v311, 1.442695
    %v327 = vpow.pop %v326
    %v328 = vsel %vm279, %v313, 0.0
    %329 = vadd.xlane.f32.xlu0 %v328
    %v330 = vpop.xlane.xlu0 %329
    %v331 = vsel %vm279, %v315, 0.0
    %332 = vadd.xlane.f32.xlu0 %v331
    %v333 = vpop.xlane.xlu0 %332
    %v334 = vsel %vm279, %v317, 0.0
    %335 = vadd.xlane.f32.xlu0 %v334
    %v336 = vpop.xlane.xlu0 %335
    %v337 = vsel %vm279, %v319, 0.0
    %338 = vadd.xlane.f32.xlu0 %v337
    %v339 = vpop.xlane.xlu0 %338
    %v340 = vsel %vm279, %v321, 0.0
    %341 = vadd.xlane.f32.xlu0 %v340
    %v342 = vpop.xlane.xlu0 %341
    %v343 = vsel %vm279, %v323, 0.0
    %344 = vadd.xlane.f32.xlu0 %v343
    %v345 = vpop.xlane.xlu0 %344
    %v346 = vsel %vm279, %v325, 0.0
    %347 = vadd.xlane.f32.xlu0 %v346
    %v348 = vpop.xlane.xlu0 %347
    %v349 = vsel %vm279, %v327, 0.0
    %350 = vadd.xlane.f32.xlu0 %v349
    %v351 = vpop.xlane.xlu0 %350
    %v352 = vrcp.pop %v330
    %v353 = vrcp.pop %v333
    %v354 = vrcp.pop %v336
    %v355 = vrcp.pop %v339
    %v356 = vrcp.pop %v342
    %v357 = vrcp.pop %v345
    %v358 = vrcp.pop %v348
    %v359 = vrcp.pop %v351
    %v360 = vmul.f32 %v313, %v352
    %v361 = vmul.f32 %v315, %v353
    %v362 = vmul.f32 %v317, %v354
    %v363 = vmul.f32 %v319, %v355
    %v364 = vmul.f32 %v321, %v356
    %v365 = vmul.f32 %v323, %v357
    %v366 = vmul.f32 %v325, %v358
    %v367 = vmul.f32 %v327, %v359
    %v368 = vpack.c.bf16 %v361, %v360
    %v369 = vpack.c.bf16 %v363, %v362
    %v370 = vpack.c.bf16 %v365, %v364
    %v371 = vpack.c.bf16 %v367, %v366
    %372 = vrot.lane.b32.xlu0 %v179, 64
    %v373 = vpop.permute.xlu0 %372
    %v376 = vsel %vm279, %v368, 0
    %v379 = vsel %vm279, %v369, 0
    %v382 = vsel %vm279, %v370, 0
    %v385 = vsel %vm279, %v371, 0
    %387 = vmatprep.subr.bf16.mxu0 0
    %388 = vmatpush1.bf16.msra.mxu0 0
    %389 = vmatprep.subr.bf16.mxu0 0
    %390 = vmatpush1.bf16.msra.mxu0 0
    %391 = vmatprep.subr.bf16.mxu0 0
    %392 = vmatpush1.bf16.msra.mxu0 0
    %393 = vmatprep.subr.bf16.mxu0 0
    %394 = vmatpush1.bf16.msra.mxu0 0
    %395 = vmatprep.subr.bf16.mxu0 0
    %396 = vmatpush1.bf16.msra.mxu0 0
    %397 = vmatprep.subr.bf16.mxu0 0
    %398 = vmatpush1.bf16.msra.mxu0 0
    %399 = vmatprep.subr.bf16.mxu0 0
    %400 = vmatpush1.bf16.msra.mxu0 0
    %401 = vmatprep.subr.bf16.mxu0 0
    %402 = vmatpush1.bf16.msra.mxu0 %v373
    %403 = vmatprep.subr.bf16.mxu0 0
    %404 = vmatpush2.bf16.msra.mxu0 0
    %405 = vmatprep.subr.bf16.mxu0 0
    %406 = vmatpush2.bf16.msra.mxu0 0
    %407 = vmatprep.subr.bf16.mxu0 0
    %408 = vmatpush2.bf16.msra.mxu0 0
    %409 = vmatprep.subr.bf16.mxu0 0
    %410 = vmatpush2.bf16.msra.mxu0 0
    %411 = vmatprep.subr.bf16.mxu0 0
    %412 = vmatpush2.bf16.msra.mxu0 0
    %413 = vmatprep.subr.bf16.mxu0 0
    %414 = vmatpush2.bf16.msra.mxu0 0
    %415 = vmatprep.subr.bf16.mxu0 0
    %416 = vmatpush2.bf16.msra.mxu0 0
    %417 = vmatprep.subr.bf16.mxu0 0
    %418 = vmatpush2.bf16.msra.mxu0 0
    %419 = vmatprep.mubr.bf16.mxu0 0
    %420 = vmatmul.mubr.bf16.gmra.mxu0 %v376
    %v421 = vpop.f32.mrf.mxu0
    %v422 = vadd.f32 0.0, %v421
    %v423 = vpop.f32.mrf.mxu0
    %v424 = vpop.f32.mrf.mxu0
    %v425 = vadd.f32 0.0, %v424
    %v426 = vpop.f32.mrf.mxu0
    %427 = vmatprep.mubr.bf16.mxu0 0
    %428 = vmatmul.mubr.bf16.gmra.mxu0 %v379
    %v429 = vpop.f32.mrf.mxu0
    %v430 = vadd.f32 0.0, %v429
    %v431 = vpop.f32.mrf.mxu0
    %v432 = vpop.f32.mrf.mxu0
    %v433 = vadd.f32 0.0, %v432
    %v434 = vpop.f32.mrf.mxu0
    %435 = vmatprep.mubr.bf16.mxu0 0
    %436 = vmatmul.mubr.bf16.gmra.mxu0 %v382
    %v437 = vpop.f32.mrf.mxu0
    %v438 = vadd.f32 0.0, %v437
    %v439 = vpop.f32.mrf.mxu0
    %v440 = vpop.f32.mrf.mxu0
    %v441 = vadd.f32 0.0, %v440
    %v442 = vpop.f32.mrf.mxu0
    %443 = vmatprep.mubr.bf16.mxu0 0
    %444 = vmatmul.mubr.bf16.gmra.mxu0 %v385
    %v445 = vpop.f32.mrf.mxu0
    %v446 = vadd.f32 0.0, %v445
    %v447 = vpop.f32.mrf.mxu0
    %v448 = vpop.f32.mrf.mxu0
    %v449 = vadd.f32 0.0, %v448
    %v450 = vpop.f32.mrf.mxu0
    %451 = vdwg.mxu0
    %v452 = vmul.f32 %v422, %v72
    %v453 = vmul.f32 %v425, %v73
    %v454 = vmul.f32 %v430, %v74
    %v455 = vmul.f32 %v433, %v75
    %v456 = vmul.f32 %v438, %v76
    %v457 = vmul.f32 %v441, %v77
    %v458 = vmul.f32 %v446, %v78
    %v459 = vmul.f32 %v449, %v79
    %v460 = vadd.f32 %v452, %v454
    %v461 = vadd.f32 %v453, %v455
    %v462 = vadd.f32 %v460, %v456
    %v463 = vadd.f32 %v461, %v457
    %v464 = vadd.f32 %v462, %v458
    %v465 = vadd.f32 %v463, %v459
    %v466 = vpack.c.bf16 %v465, %v464
    %v471 = vunpack.c.l.b16 %v85
    %v472 = vunpack.c.l.b16 %v86
    %v473 = vunpack.c.l.b16 %v87
    %v474 = vunpack.c.l.b16 %v88
    %v475 = vpack.c.b16 %v472, %v471
    %v476 = vpack.c.b16 %v474, %v473
    %v480 = vsel %vm23, %v466, 0
    %482 = vmatprep.subr.bf16.mxu0 0
    %483 = vmatpush1.bf16.msra.mxu0 0
    %484 = vmatprep.subr.bf16.mxu0 0
    %485 = vmatpush1.bf16.msra.mxu0 0
    %486 = vmatprep.subr.bf16.mxu0 0
    %487 = vmatpush1.bf16.msra.mxu0 0
    %488 = vmatprep.subr.bf16.mxu0 0
    %489 = vmatpush1.bf16.msra.mxu0 0
    %490 = vmatprep.subr.bf16.mxu0 0
    %491 = vmatpush1.bf16.msra.mxu0 0
    %492 = vmatprep.subr.bf16.mxu0 0
    %493 = vmatpush1.bf16.msra.mxu0 0
    %494 = vmatprep.subr.bf16.mxu0 0
    %495 = vmatpush1.bf16.msra.mxu0 %v476
    %496 = vmatprep.subr.bf16.mxu0 0
    %497 = vmatpush1.bf16.msra.mxu0 %v475
    %498 = vmatprep.subr.bf16.mxu0 0
    %499 = vmatpush2.bf16.msra.mxu0 0
    %500 = vmatprep.subr.bf16.mxu0 0
    %501 = vmatpush2.bf16.msra.mxu0 0
    %502 = vmatprep.subr.bf16.mxu0 0
    %503 = vmatpush2.bf16.msra.mxu0 0
    %504 = vmatprep.subr.bf16.mxu0 0
    %505 = vmatpush2.bf16.msra.mxu0 0
    %506 = vmatprep.subr.bf16.mxu0 0
    %507 = vmatpush2.bf16.msra.mxu0 0
    %508 = vmatprep.subr.bf16.mxu0 0
    %509 = vmatpush2.bf16.msra.mxu0 0
    %510 = vmatprep.subr.bf16.mxu0 0
    %511 = vmatpush2.bf16.msra.mxu0 0
    %512 = vmatprep.subr.bf16.mxu0 0
    %513 = vmatpush2.bf16.msra.mxu0 0
    %514 = vmatprep.mubr.bf16.mxu0 0
    %515 = vmatmul.mubr.bf16.gmra.mxu0 %v480
    %v516 = vpop.f32.mrf.mxu0
    %v517 = vadd.f32 0.0, %v516
    %v518 = vpop.f32.mrf.mxu0
    %v519 = vpop.f32.mrf.mxu0
    %v520 = vadd.f32 0.0, %v519
    %v521 = vpop.f32.mrf.mxu0
    %522 = vdwg.mxu0
    %v523 = vld [vmem:[%s2 + $0x5] sm:$0x1]
    %v524 = vlaneseq
    %v525 = vshrl.u32 %v524, 7
    %v526 = vsub.s32 0, %v525
    %v527 = vrot.slane %v523, %v526
    %v528 = vadd.f32 %v517, %v527
    %v529 = vadd.f32 %v520, %v527
    %v530 = vadd.f32 %v528, %v61
    %v531 = vadd.f32 %v529, %v62
    %v532 = vld [vmem:[%s2 + $0x6] sm:$0x1]
    %v533 = vld [vmem:[%s2 + $0x7] sm:$0x1]
    %v534 = vsel %vm23, %v530, 0.0
    %535 = vadd.xlane.f32.xlu0 %v534
    %v536 = vpop.xlane.xlu0 %535
    %v537 = vsel %vm23, %v531, 0.0
    %538 = vadd.xlane.f32.xlu0 %v537
    %v539 = vpop.xlane.xlu0 %538
    %v540 = vmul.f32 %v536, %v30
    %v541 = vmul.f32 %v539, %v30
    %v542 = vsub.f32 %v530, %v540
    %v543 = vsub.f32 %v531, %v541
    %v544 = vmul.f32 %v542, %v542
    %v545 = vmul.f32 %v543, %v543
    %v546 = vsel %vm23, %v544, 0.0
    %547 = vadd.xlane.f32.xlu0 %v546
    %v548 = vpop.xlane.xlu0 %547
    %v549 = vsel %vm23, %v545, 0.0
    %550 = vadd.xlane.f32.xlu0 %v549
    %v551 = vpop.xlane.xlu0 %550
    %v552 = vmul.f32 %v548, %v30
    %v553 = vmul.f32 %v551, %v30
    %v554 = vadd.f32 %v552, 1e-12
    %v555 = vadd.f32 %v553, 1e-12
    %v556 = vrsqrt.pop %v554
    %v557 = vrsqrt.pop %v555
    %v558 = vmul.f32 %v542, %v556
    %v559 = vmul.f32 %v543, %v557
    %v560 = vlaneseq
    %v561 = vshrl.u32 %v560, 7
    %v562 = vsub.s32 0, %v561
    %v563 = vrot.slane %v532, %v562
    %v564 = vmul.f32 %v558, %v563
    %v565 = vmul.f32 %v559, %v563
    %v566 = vlaneseq
    %v567 = vshrl.u32 %v566, 7
    %v568 = vsub.s32 0, %v567
    %v569 = vrot.slane %v533, %v568
    %v570 = vadd.f32 %v564, %v569
    %v571 = vadd.f32 %v565, %v569
    %v572 = vpack.c.bf16 %v571, %v570
    %v577 = vunpack.c.l.b16 %v90
    %v578 = vunpack.c.l.b16 %v91
    %v579 = vunpack.c.l.b16 %v92
    %v580 = vunpack.c.l.b16 %v93
    %v581 = vpack.c.b16 %v578, %v577
    %v582 = vpack.c.b16 %v580, %v579
    %v586 = vsel %vm23, %v572, 0
    %588 = vmatprep.subr.bf16.mxu0 0
    %589 = vmatpush1.bf16.msra.mxu0 0
    %590 = vmatprep.subr.bf16.mxu0 0
    %591 = vmatpush1.bf16.msra.mxu0 0
    %592 = vmatprep.subr.bf16.mxu0 0
    %593 = vmatpush1.bf16.msra.mxu0 0
    %594 = vmatprep.subr.bf16.mxu0 0
    %595 = vmatpush1.bf16.msra.mxu0 0
    %596 = vmatprep.subr.bf16.mxu0 0
    %597 = vmatpush1.bf16.msra.mxu0 0
    %598 = vmatprep.subr.bf16.mxu0 0
    %599 = vmatpush1.bf16.msra.mxu0 0
    %600 = vmatprep.subr.bf16.mxu0 0
    %601 = vmatpush1.bf16.msra.mxu0 %v582
    %602 = vmatprep.subr.bf16.mxu0 0
    %603 = vmatpush1.bf16.msra.mxu0 %v581
    %604 = vmatprep.subr.bf16.mxu0 0
    %605 = vmatpush2.bf16.msra.mxu0 0
    %606 = vmatprep.subr.bf16.mxu0 0
    %607 = vmatpush2.bf16.msra.mxu0 0
    %608 = vmatprep.subr.bf16.mxu0 0
    %609 = vmatpush2.bf16.msra.mxu0 0
    %610 = vmatprep.subr.bf16.mxu0 0
    %611 = vmatpush2.bf16.msra.mxu0 0
    %612 = vmatprep.subr.bf16.mxu0 0
    %613 = vmatpush2.bf16.msra.mxu0 0
    %614 = vmatprep.subr.bf16.mxu0 0
    %615 = vmatpush2.bf16.msra.mxu0 0
    %616 = vmatprep.subr.bf16.mxu0 0
    %617 = vmatpush2.bf16.msra.mxu0 0
    %618 = vmatprep.subr.bf16.mxu0 0
    %619 = vmatpush2.bf16.msra.mxu0 0
    %620 = vmatprep.mubr.bf16.mxu0 0
    %621 = vmatmul.mubr.bf16.gmra.mxu0 %v586
    %v622 = vpop.f32.mrf.mxu0
    %v623 = vadd.f32 0.0, %v622
    %v624 = vpop.f32.mrf.mxu0
    %v625 = vpop.f32.mrf.mxu0
    %v626 = vadd.f32 0.0, %v625
    %v627 = vpop.f32.mrf.mxu0
    %628 = vdwg.mxu0
    %v629 = vld [vmem:[%s2 + $0x8] sm:$0x1]
    %v630 = vlaneseq
    %v631 = vshrl.u32 %v630, 7
    %v632 = vsub.s32 0, %v631
    %v633 = vrot.slane %v629, %v632
    %v634 = vadd.f32 %v623, %v633
    %v635 = vadd.f32 %v626, %v633
    %v636 = vmul.f32 %v634, 0.5
    %v637 = vmul.f32 %v635, 0.5
    %v638 = vmul.f32 %v634, 0.044715
    %v639 = vmul.f32 %v635, 0.044715
    %v640 = vmul.f32 %v638, %v634
    %v641 = vmul.f32 %v639, %v635
    %v642 = vmul.f32 %v640, %v634
    %v643 = vmul.f32 %v641, %v635
    %v644 = vadd.f32 %v634, %v642
    %v645 = vadd.f32 %v635, %v643
    %v646 = vmul.f32 %v644, 0.7978846
    %v647 = vmul.f32 %v645, 0.7978846
    %v648 = vtanh.pop %v646
    %v649 = vtanh.pop %v647
    %v650 = vadd.f32 %v648, 1.0
    %v651 = vadd.f32 %v649, 1.0
    %v652 = vmul.f32 %v636, %v650
    %v653 = vmul.f32 %v637, %v651
    %v654 = vpack.c.bf16 %v653, %v652
    %v663 = vunpack.c.l.b16 %v95
    %v664 = vunpack.c.l.b16 %v96
    %v665 = vunpack.c.l.b16 %v97
    %v666 = vunpack.c.l.b16 %v98
    %v667 = vunpack.c.l.b16 %v99
    %v668 = vunpack.c.l.b16 %v100
    %v669 = vunpack.c.l.b16 %v101
    %v670 = vunpack.c.l.b16 %v102
    %v671 = vpack.c.b16 %v664, %v663
    %v672 = vpack.c.b16 %v666, %v665
    %v673 = vpack.c.b16 %v668, %v667
    %v674 = vpack.c.b16 %v670, %v669
    %vm679 = vcmask 523264
    %v681 = vsel %vm679, %v654, 0
    %683 = vmatprep.subr.bf16.mxu0 0
    %684 = vmatpush1.bf16.msra.mxu0 0
    %685 = vmatprep.subr.bf16.mxu0 0
    %686 = vmatpush1.bf16.msra.mxu0 0
    %687 = vmatprep.subr.bf16.mxu0 0
    %688 = vmatpush1.bf16.msra.mxu0 0
    %689 = vmatprep.subr.bf16.mxu0 0
    %690 = vmatpush1.bf16.msra.mxu0 0
    %691 = vmatprep.subr.bf16.mxu0 0
    %692 = vmatpush1.bf16.msra.mxu0 %v674
    %693 = vmatprep.subr.bf16.mxu0 0
    %694 = vmatpush1.bf16.msra.mxu0 %v673
    %695 = vmatprep.subr.bf16.mxu0 0
    %696 = vmatpush1.bf16.msra.mxu0 %v672
    %697 = vmatprep.subr.bf16.mxu0 0
    %698 = vmatpush1.bf16.msra.mxu0 %v671
    %699 = vmatprep.subr.bf16.mxu0 0
    %700 = vmatpush2.bf16.msra.mxu0 0
    %701 = vmatprep.subr.bf16.mxu0 0
    %702 = vmatpush2.bf16.msra.mxu0 0
    %703 = vmatprep.subr.bf16.mxu0 0
    %704 = vmatpush2.bf16.msra.mxu0 0
    %705 = vmatprep.subr.bf16.mxu0 0
    %706 = vmatpush2.bf16.msra.mxu0 0
    %707 = vmatprep.subr.bf16.mxu0 0
    %708 = vmatpush2.bf16.msra.mxu0 0
    %709 = vmatprep.subr.bf16.mxu0 0
    %710 = vmatpush2.bf16.msra.mxu0 0
    %711 = vmatprep.subr.bf16.mxu0 0
    %712 = vmatpush2.bf16.msra.mxu0 0
    %713 = vmatprep.subr.bf16.mxu0 0
    %714 = vmatpush2.bf16.msra.mxu0 0
    %715 = vmatprep.mubr.bf16.mxu0 0
    %716 = vmatmul.mubr.bf16.gmra.mxu0 %v681
    %v717 = vpop.f32.mrf.mxu0
    %v718 = vadd.f32 0.0, %v717
    %v719 = vpop.f32.mrf.mxu0
    %v720 = vpop.f32.mrf.mxu0
    %v721 = vadd.f32 0.0, %v720
    %v722 = vpop.f32.mrf.mxu0
    %723 = vdwg.mxu0
    %v724 = vld [vmem:[%s2 + $0x9] sm:$0x1]
    %v725 = vlaneseq
    %v726 = vshrl.u32 %v725, 7
    %v727 = vsub.s32 0, %v726
    %v728 = vrot.slane %v724, %v727
    %v729 = vadd.f32 %v718, %v728
    %v730 = vadd.f32 %v721, %v728
    %v731 = vadd.f32 %v729, %v570
    %v732 = vadd.f32 %v730, %v571
    %v733 = vld [vmem:[%s2 + $0xa] sm:$0x1]
    %v734 = vld [vmem:[%s2 + $0xb] sm:$0x1]
    %v735 = vsel %vm23, %v731, 0.0
    %736 = vadd.xlane.f32.xlu0 %v735
    %v737 = vpop.xlane.xlu0 %736
    %v738 = vsel %vm23, %v732, 0.0
    %739 = vadd.xlane.f32.xlu0 %v738
    %v740 = vpop.xlane.xlu0 %739
    %v741 = vmul.f32 %v737, %v30
    %v742 = vmul.f32 %v740, %v30
    %v743 = vsub.f32 %v731, %v741
    %v744 = vsub.f32 %v732, %v742
    %v745 = vmul.f32 %v743, %v743
    %v746 = vmul.f32 %v744, %v744
    %v747 = vsel %vm23, %v745, 0.0
    %748 = vadd.xlane.f32.xlu0 %v747
    %v749 = vpop.xlane.xlu0 %748
    %v750 = vsel %vm23, %v746, 0.0
    %751 = vadd.xlane.f32.xlu0 %v750
    %v752 = vpop.xlane.xlu0 %751
    %v753 = vmul.f32 %v749, %v30
    %v754 = vmul.f32 %v752, %v30
    %v755 = vadd.f32 %v753, 1e-12
    %v756 = vadd.f32 %v754, 1e-12
    %v757 = vrsqrt.pop %v755
    %v758 = vrsqrt.pop %v756
    %v759 = vmul.f32 %v743, %v757
    %v760 = vmul.f32 %v744, %v758
    %v761 = vlaneseq
    %v762 = vshrl.u32 %v761, 7
    %v763 = vsub.s32 0, %v762
    %v764 = vrot.slane %v733, %v763
    %v765 = vmul.f32 %v759, %v764
    %v766 = vmul.f32 %v760, %v764
    %v767 = vlaneseq
    %v768 = vshrl.u32 %v767, 7
    %v769 = vsub.s32 0, %v768
    %v770 = vrot.slane %v734, %v769
    %v771 = vadd.f32 %v765, %v770
    %v772 = vadd.f32 %v766, %v770
    %s773 = scalar_lea.vmem %s1, 128
    %v774 = vld [vmem:[%s773] sm:$0xf]
    %v775 = vld [vmem:[%s773 + $0x4] sm:$0xf]
    %v776 = vld [vmem:[%s773 + $0x8] sm:$0xf]
    %v777 = vld [vmem:[%s773 + $0xc] sm:$0xf]
    %s778 = scalar_lea.vmem %s1, 160
    %v779 = vld [vmem:[%s778] sm:$0xf]
    %v780 = vld [vmem:[%s778 + $0x4] sm:$0xf]
    %v781 = vld [vmem:[%s778 + $0x8] sm:$0xf]
    %v782 = vld [vmem:[%s778 + $0xc] sm:$0xf]
    %s783 = scalar_lea.vmem %s1, 192
    %v784 = vld [vmem:[%s783] sm:$0xf]
    %v785 = vld [vmem:[%s783 + $0x4] sm:$0xf]
    %v786 = vld [vmem:[%s783 + $0x8] sm:$0xf]
    %v787 = vld [vmem:[%s783 + $0xc] sm:$0xf]
    %s788 = scalar_lea.vmem %s1, 224
    %v789 = vld [vmem:[%s788] sm:$0xf]
    %v790 = vld [vmem:[%s788 + $0x4] sm:$0xf]
    %v791 = vld [vmem:[%s788 + $0x8] sm:$0xf]
    %v792 = vld [vmem:[%s788 + $0xc] sm:$0xf]
    %v793 = vld [vmem:[%s788 + $0x10] sm:$0xf]
    %v794 = vld [vmem:[%s788 + $0x14] sm:$0xf]
    %v795 = vld [vmem:[%s788 + $0x18] sm:$0xf]
    %v796 = vld [vmem:[%s788 + $0x1c] sm:$0xf]
    %v797 = vpack.c.bf16 %v772, %v771
    %v802 = vunpack.c.l.b16 %v774
    %v803 = vunpack.c.l.b16 %v775
    %v804 = vunpack.c.l.b16 %v776
    %v805 = vunpack.c.l.b16 %v777
    %v806 = vpack.c.b16 %v803, %v802
    %v807 = vpack.c.b16 %v805, %v804
    %v811 = vsel %vm23, %v797, 0
    %813 = vmatprep.subr.bf16.mxu0 0
    %814 = vmatpush1.bf16.msra.mxu0 0
    %815 = vmatprep.subr.bf16.mxu0 0
    %816 = vmatpush1.bf16.msra.mxu0 0
    %817 = vmatprep.subr.bf16.mxu0 0
    %818 = vmatpush1.bf16.msra.mxu0 0
    %819 = vmatprep.subr.bf16.mxu0 0
    %820 = vmatpush1.bf16.msra.mxu0 0
    %821 = vmatprep.subr.bf16.mxu0 0
    %822 = vmatpush1.bf16.msra.mxu0 0
    %823 = vmatprep.subr.bf16.mxu0 0
    %824 = vmatpush1.bf16.msra.mxu0 0
    %825 = vmatprep.subr.bf16.mxu0 0
    %826 = vmatpush1.bf16.msra.mxu0 %v807
    %827 = vmatprep.subr.bf16.mxu0 0
    %828 = vmatpush1.bf16.msra.mxu0 %v806
    %829 = vmatprep.subr.bf16.mxu0 0
    %830 = vmatpush2.bf16.msra.mxu0 0
    %831 = vmatprep.subr.bf16.mxu0 0
    %832 = vmatpush2.bf16.msra.mxu0 0
    %833 = vmatprep.subr.bf16.mxu0 0
    %834 = vmatpush2.bf16.msra.mxu0 0
    %835 = vmatprep.subr.bf16.mxu0 0
    %836 = vmatpush2.bf16.msra.mxu0 0
    %837 = vmatprep.subr.bf16.mxu0 0
    %838 = vmatpush2.bf16.msra.mxu0 0
    %839 = vmatprep.subr.bf16.mxu0 0
    %840 = vmatpush2.bf16.msra.mxu0 0
    %841 = vmatprep.subr.bf16.mxu0 0
    %842 = vmatpush2.bf16.msra.mxu0 0
    %843 = vmatprep.subr.bf16.mxu0 0
    %844 = vmatpush2.bf16.msra.mxu0 0
    %845 = vmatprep.mubr.bf16.mxu0 0
    %846 = vmatmul.mubr.bf16.gmra.mxu0 %v811
    %v847 = vpop.f32.mrf.mxu0
    %v848 = vadd.f32 0.0, %v847
    %v849 = vpop.f32.mrf.mxu0
    %v850 = vpop.f32.mrf.mxu0
    %v851 = vadd.f32 0.0, %v850
    %v852 = vpop.f32.mrf.mxu0
    %853 = vdwg.mxu0
    %v854 = vld [vmem:[%s2 + $0xc] sm:$0x1]
    %v855 = vlaneseq
    %v856 = vshrl.u32 %v855, 7
    %v857 = vsub.s32 0, %v856
    %v858 = vrot.slane %v854, %v857
    %v859 = vadd.f32 %v848, %v858
    %v860 = vadd.f32 %v851, %v858
    %v861 = vmul.f32 %v859, %v72
    %v862 = vmul.f32 %v860, %v73
    %v863 = vmul.f32 %v859, %v74
    %v864 = vmul.f32 %v860, %v75
    %v865 = vmul.f32 %v859, %v76
    %v866 = vmul.f32 %v860, %v77
    %v867 = vmul.f32 %v859, %v78
    %v868 = vmul.f32 %v860, %v79
    %v869 = vpack.c.bf16 %v862, %v861
    %v870 = vpack.c.bf16 %v864, %v863
    %v871 = vpack.c.bf16 %v866, %v865
    %v872 = vpack.c.bf16 %v868, %v867
    %v873 = vpack.c.bf16 %v860, %v859
    %875 = vrot.lane.b32.xlu0 %v873, 96
    %v876 = vpop.permute.xlu0 %875
    %v878 = vsel %vm23, %v869, 0
    %v881 = vsel %vm23, %v870, 0
    %v884 = vsel %vm23, %v871, 0
    %v887 = vsel %vm23, %v872, 0
    %v890 = vsel %vm23, %v876, 0
    %892 = vmatprep.subr.bf16.mxu0 0
    %893 = vmatpush1.bf16.xpose.msra.mxu0 0
    %894 = vmatprep.subr.bf16.mxu0 0
    %895 = vmatpush1.bf16.xpose.msra.mxu0 0
    %896 = vmatprep.subr.bf16.mxu0 0
    %897 = vmatpush1.bf16.xpose.msra.mxu0 0
    %898 = vmatprep.subr.bf16.mxu0 0
    %899 = vmatpush1.bf16.xpose.msra.mxu0 0
    %900 = vmatprep.subr.bf16.mxu0 0
    %901 = vmatpush1.bf16.xpose.msra.mxu0 0
    %902 = vmatprep.subr.bf16.mxu0 0
    %903 = vmatpush1.bf16.xpose.msra.mxu0 0
    %904 = vmatprep.subr.bf16.mxu0 0
    %905 = vmatpush1.bf16.xpose.msra.mxu0 0
    %906 = vmatprep.subr.bf16.mxu0 0
    %907 = vmatpush1.bf16.xpose.msra.mxu0 %v890
    %908 = vmatprep.subr.bf16.mxu0 0
    %909 = vmatpush2.bf16.xpose.msra.mxu0 0
    %910 = vmatprep.subr.bf16.mxu0 0
    %911 = vmatpush2.bf16.xpose.msra.mxu0 0
    %912 = vmatprep.subr.bf16.mxu0 0
    %913 = vmatpush2.bf16.xpose.msra.mxu0 0
    %914 = vmatprep.subr.bf16.mxu0 0
    %915 = vmatpush2.bf16.xpose.msra.mxu0 0
    %916 = vmatprep.subr.bf16.mxu0 0
    %917 = vmatpush2.bf16.xpose.msra.mxu0 0
    %918 = vmatprep.subr.bf16.mxu0 0
    %919 = vmatpush2.bf16.xpose.msra.mxu0 0
    %920 = vmatprep.subr.bf16.mxu0 0
    %921 = vmatpush2.bf16.xpose.msra.mxu0 0
    %922 = vmatprep.subr.bf16.mxu0 0
    %923 = vmatpush2.bf16.xpose.msra.mxu0 0
    %924 = vmatprep.mubr.bf16.mxu0 0
    %925 = vmatmul.mubr.bf16.gmra.mxu0 %v878
    %v926 = vpop.f32.mrf.mxu0
    %v927 = vadd.f32 0.0, %v926
    %v928 = vpop.f32.mrf.mxu0
    %v929 = vpop.f32.mrf.mxu0
    %v930 = vadd.f32 0.0, %v929
    %v931 = vpop.f32.mrf.mxu0
    %932 = vmatprep.mubr.bf16.mxu0 0
    %933 = vmatmul.mubr.bf16.gmra.mxu0 %v881
    %v934 = vpop.f32.mrf.mxu0
    %v935 = vadd.f32 0.0, %v934
    %v936 = vpop.f32.mrf.mxu0
    %v937 = vpop.f32.mrf.mxu0
    %v938 = vadd.f32 0.0, %v937
    %v939 = vpop.f32.mrf.mxu0
    %940 = vmatprep.mubr.bf16.mxu0 0
    %941 = vmatmul.mubr.bf16.gmra.mxu0 %v884
    %v942 = vpop.f32.mrf.mxu0
    %v943 = vadd.f32 0.0, %v942
    %v944 = vpop.f32.mrf.mxu0
    %v945 = vpop.f32.mrf.mxu0
    %v946 = vadd.f32 0.0, %v945
    %v947 = vpop.f32.mrf.mxu0
    %948 = vmatprep.mubr.bf16.mxu0 0
    %949 = vmatmul.mubr.bf16.gmra.mxu0 %v887
    %v950 = vpop.f32.mrf.mxu0
    %v951 = vadd.f32 0.0, %v950
    %v952 = vpop.f32.mrf.mxu0
    %v953 = vpop.f32.mrf.mxu0
    %v954 = vadd.f32 0.0, %v953
    %v955 = vpop.f32.mrf.mxu0
    %956 = vdwg.mxu0
    %v957 = vmul.f32 %v927, 0.35355338
    %v958 = vmul.f32 %v930, 0.35355338
    %v959 = vmul.f32 %v935, 0.35355338
    %v960 = vmul.f32 %v938, 0.35355338
    %v961 = vmul.f32 %v943, 0.35355338
    %v962 = vmul.f32 %v946, 0.35355338
    %v963 = vmul.f32 %v951, 0.35355338
    %v964 = vmul.f32 %v954, 0.35355338
    %v965 = vadd.f32 %v957, %v63
    %v966 = vadd.f32 %v958, %v64
    %v967 = vadd.f32 %v959, %v65
    %v968 = vadd.f32 %v960, %v66
    %v969 = vadd.f32 %v961, %v67
    %v970 = vadd.f32 %v962, %v68
    %v971 = vadd.f32 %v963, %v69
    %v972 = vadd.f32 %v964, %v70
    %v973 = vsel %vm279, %v965, -inf
    %974 = vmax.xlane.f32.xlu0 %v973
    %v975 = vpop.xlane.xlu0 %974
    %v976 = vsel %vm279, %v966, -inf
    %977 = vmax.xlane.f32.xlu0 %v976
    %v978 = vpop.xlane.xlu0 %977
    %v979 = vsel %vm279, %v967, -inf
    %980 = vmax.xlane.f32.xlu0 %v979
    %v981 = vpop.xlane.xlu0 %980
    %v982 = vsel %vm279, %v968, -inf
    %983 = vmax.xlane.f32.xlu0 %v982
    %v984 = vpop.xlane.xlu0 %983
    %v985 = vsel %vm279, %v969, -inf
    %986 = vmax.xlane.f32.xlu0 %v985
    %v987 = vpop.xlane.xlu0 %986
    %v988 = vsel %vm279, %v970, -inf
    %989 = vmax.xlane.f32.xlu0 %v988
    %v990 = vpop.xlane.xlu0 %989
    %v991 = vsel %vm279, %v971, -inf
    %992 = vmax.xlane.f32.xlu0 %v991
    %v993 = vpop.xlane.xlu0 %992
    %v994 = vsel %vm279, %v972, -inf
    %995 = vmax.xlane.f32.xlu0 %v994
    %v996 = vpop.xlane.xlu0 %995
    %v997 = vsub.f32 %v965, %v975
    %v998 = vsub.f32 %v966, %v978
    %v999 = vsub.f32 %v967, %v981
    %v1000 = vsub.f32 %v968, %v984
    %v1001 = vsub.f32 %v969, %v987
    %v1002 = vsub.f32 %v970, %v990
    %v1003 = vsub.f32 %v971, %v993
    %v1004 = vsub.f32 %v972, %v996
    %v1005 = vmul.f32 %v997, 1.442695
    %v1006 = vpow.pop %v1005
    %v1007 = vmul.f32 %v998, 1.442695
    %v1008 = vpow.pop %v1007
    %v1009 = vmul.f32 %v999, 1.442695
    %v1010 = vpow.pop %v1009
    %v1011 = vmul.f32 %v1000, 1.442695
    %v1012 = vpow.pop %v1011
    %v1013 = vmul.f32 %v1001, 1.442695
    %v1014 = vpow.pop %v1013
    %v1015 = vmul.f32 %v1002, 1.442695
    %v1016 = vpow.pop %v1015
    %v1017 = vmul.f32 %v1003, 1.442695
    %v1018 = vpow.pop %v1017
    %v1019 = vmul.f32 %v1004, 1.442695
    %v1020 = vpow.pop %v1019
    %v1021 = vsel %vm279, %v1006, 0.0
    %1022 = vadd.xlane.f32.xlu0 %v1021
    %v1023 = vpop.xlane.xlu0 %1022
    %v1024 = vsel %vm279, %v1008, 0.0
    %1025 = vadd.xlane.f32.xlu0 %v1024
    %v1026 = vpop.xlane.xlu0 %1025
    %v1027 = vsel %vm279, %v1010, 0.0
    %1028 = vadd.xlane.f32.xlu0 %v1027
    %v1029 = vpop.xlane.xlu0 %1028
    %v1030 = vsel %vm279, %v1012, 0.0
    %1031 = vadd.xlane.f32.xlu0 %v1030
    %v1032 = vpop.xlane.xlu0 %1031
    %v1033 = vsel %vm279, %v1014, 0.0
    %1034 = vadd.xlane.f32.xlu0 %v1033
    %v1035 = vpop.xlane.xlu0 %1034
    %v1036 = vsel %vm279, %v1016, 0.0
    %1037 = vadd.xlane.f32.xlu0 %v1036
    %v1038 = vpop.xlane.xlu0 %1037
    %v1039 = vsel %vm279, %v1018, 0.0
    %1040 = vadd.xlane.f32.xlu0 %v1039
    %v1041 = vpop.xlane.xlu0 %1040
    %v1042 = vsel %vm279, %v1020, 0.0
    %1043 = vadd.xlane.f32.xlu0 %v1042
    %v1044 = vpop.xlane.xlu0 %1043
    %v1045 = vrcp.pop %v1023
    %v1046 = vrcp.pop %v1026
    %v1047 = vrcp.pop %v1029
    %v1048 = vrcp.pop %v1032
    %v1049 = vrcp.pop %v1035
    %v1050 = vrcp.pop %v1038
    %v1051 = vrcp.pop %v1041
    %v1052 = vrcp.pop %v1044
    %v1053 = vmul.f32 %v1006, %v1045
    %v1054 = vmul.f32 %v1008, %v1046
    %v1055 = vmul.f32 %v1010, %v1047
    %v1056 = vmul.f32 %v1012, %v1048
    %v1057 = vmul.f32 %v1014, %v1049
    %v1058 = vmul.f32 %v1016, %v1050
    %v1059 = vmul.f32 %v1018, %v1051
    %v1060 = vmul.f32 %v1020, %v1052
    %v1061 = vpack.c.bf16 %v1054, %v1053
    %v1062 = vpack.c.bf16 %v1056, %v1055
    %v1063 = vpack.c.bf16 %v1058, %v1057
    %v1064 = vpack.c.bf16 %v1060, %v1059
    %1065 = vrot.lane.b32.xlu0 %v873, 64
    %v1066 = vpop.permute.xlu0 %1065
    %v1069 = vsel %vm279, %v1061, 0
    %v1072 = vsel %vm279, %v1062, 0
    %v1075 = vsel %vm279, %v1063, 0
    %v1078 = vsel %vm279, %v1064, 0
    %1080 = vmatprep.subr.bf16.mxu0 0
    %1081 = vmatpush1.bf16.msra.mxu0 0
    %1082 = vmatprep.subr.bf16.mxu0 0
    %1083 = vmatpush1.bf16.msra.mxu0 0
    %1084 = vmatprep.subr.bf16.mxu0 0
    %1085 = vmatpush1.bf16.msra.mxu0 0
    %1086 = vmatprep.subr.bf16.mxu0 0
    %1087 = vmatpush1.bf16.msra.mxu0 0
    %1088 = vmatprep.subr.bf16.mxu0 0
    %1089 = vmatpush1.bf16.msra.mxu0 0
    %1090 = vmatprep.subr.bf16.mxu0 0
    %1091 = vmatpush1.bf16.msra.mxu0 0
    %1092 = vmatprep.subr.bf16.mxu0 0
    %1093 = vmatpush1.bf16.msra.mxu0 0
    %1094 = vmatprep.subr.bf16.mxu0 0
    %1095 = vmatpush1.bf16.msra.mxu0 %v1066
    %1096 = vmatprep.subr.bf16.mxu0 0
    %1097 = vmatpush2.bf16.msra.mxu0 0
    %1098 = vmatprep.subr.bf16.mxu0 0
    %1099 = vmatpush2.bf16.msra.mxu0 0
    %1100 = vmatprep.subr.bf16.mxu0 0
    %1101 = vmatpush2.bf16.msra.mxu0 0
    %1102 = vmatprep.subr.bf16.mxu0 0
    %1103 = vmatpush2.bf16.msra.mxu0 0
    %1104 = vmatprep.subr.bf16.mxu0 0
    %1105 = vmatpush2.bf16.msra.mxu0 0
    %1106 = vmatprep.subr.bf16.mxu0 0
    %1107 = vmatpush2.bf16.msra.mxu0 0
    %1108 = vmatprep.subr.bf16.mxu0 0
    %1109 = vmatpush2.bf16.msra.mxu0 0
    %1110 = vmatprep.subr.bf16.mxu0 0
    %1111 = vmatpush2.bf16.msra.mxu0 0
    %1112 = vmatprep.mubr.bf16.mxu0 0
    %1113 = vmatmul.mubr.bf16.gmra.mxu0 %v1069
    %v1114 = vpop.f32.mrf.mxu0
    %v1115 = vadd.f32 0.0, %v1114
    %v1116 = vpop.f32.mrf.mxu0
    %v1117 = vpop.f32.mrf.mxu0
    %v1118 = vadd.f32 0.0, %v1117
    %v1119 = vpop.f32.mrf.mxu0
    %1120 = vmatprep.mubr.bf16.mxu0 0
    %1121 = vmatmul.mubr.bf16.gmra.mxu0 %v1072
    %v1122 = vpop.f32.mrf.mxu0
    %v1123 = vadd.f32 0.0, %v1122
    %v1124 = vpop.f32.mrf.mxu0
    %v1125 = vpop.f32.mrf.mxu0
    %v1126 = vadd.f32 0.0, %v1125
    %v1127 = vpop.f32.mrf.mxu0
    %1128 = vmatprep.mubr.bf16.mxu0 0
    %1129 = vmatmul.mubr.bf16.gmra.mxu0 %v1075
    %v1130 = vpop.f32.mrf.mxu0
    %v1131 = vadd.f32 0.0, %v1130
    %v1132 = vpop.f32.mrf.mxu0
    %v1133 = vpop.f32.mrf.mxu0
    %v1134 = vadd.f32 0.0, %v1133
    %v1135 = vpop.f32.mrf.mxu0
    %1136 = vmatprep.mubr.bf16.mxu0 0
    %1137 = vmatmul.mubr.bf16.gmra.mxu0 %v1078
    %v1138 = vpop.f32.mrf.mxu0
    %v1139 = vadd.f32 0.0, %v1138
    %v1140 = vpop.f32.mrf.mxu0
    %v1141 = vpop.f32.mrf.mxu0
    %v1142 = vadd.f32 0.0, %v1141
    %v1143 = vpop.f32.mrf.mxu0
    %1144 = vdwg.mxu0
    %v1145 = vmul.f32 %v1115, %v72
    %v1146 = vmul.f32 %v1118, %v73
    %v1147 = vmul.f32 %v1123, %v74
    %v1148 = vmul.f32 %v1126, %v75
    %v1149 = vmul.f32 %v1131, %v76
    %v1150 = vmul.f32 %v1134, %v77
    %v1151 = vmul.f32 %v1139, %v78
    %v1152 = vmul.f32 %v1142, %v79
    %v1153 = vadd.f32 %v1145, %v1147
    %v1154 = vadd.f32 %v1146, %v1148
    %v1155 = vadd.f32 %v1153, %v1149
    %v1156 = vadd.f32 %v1154, %v1150
    %v1157 = vadd.f32 %v1155, %v1151
    %v1158 = vadd.f32 %v1156, %v1152
    %v1159 = vpack.c.bf16 %v1158, %v1157
    %v1164 = vunpack.c.l.b16 %v779
    %v1165 = vunpack.c.l.b16 %v780
    %v1166 = vunpack.c.l.b16 %v781
    %v1167 = vunpack.c.l.b16 %v782
    %v1168 = vpack.c.b16 %v1165, %v1164
    %v1169 = vpack.c.b16 %v1167, %v1166
    %v1173 = vsel %vm23, %v1159, 0
    %1175 = vmatprep.subr.bf16.mxu0 0
    %1176 = vmatpush1.bf16.msra.mxu0 0
    %1177 = vmatprep.subr.bf16.mxu0 0
    %1178 = vmatpush1.bf16.msra.mxu0 0
    %1179 = vmatprep.subr.bf16.mxu0 0
    %1180 = vmatpush1.bf16.msra.mxu0 0
    %1181 = vmatprep.subr.bf16.mxu0 0
    %1182 = vmatpush1.bf16.msra.mxu0 0
    %1183 = vmatprep.subr.bf16.mxu0 0
    %1184 = vmatpush1.bf16.msra.mxu0 0
    %1185 = vmatprep.subr.bf16.mxu0 0
    %1186 = vmatpush1.bf16.msra.mxu0 0
    %1187 = vmatprep.subr.bf16.mxu0 0
    %1188 = vmatpush1.bf16.msra.mxu0 %v1169
    %1189 = vmatprep.subr.bf16.mxu0 0
    %1190 = vmatpush1.bf16.msra.mxu0 %v1168
    %1191 = vmatprep.subr.bf16.mxu0 0
    %1192 = vmatpush2.bf16.msra.mxu0 0
    %1193 = vmatprep.subr.bf16.mxu0 0
    %1194 = vmatpush2.bf16.msra.mxu0 0
    %1195 = vmatprep.subr.bf16.mxu0 0
    %1196 = vmatpush2.bf16.msra.mxu0 0
    %1197 = vmatprep.subr.bf16.mxu0 0
    %1198 = vmatpush2.bf16.msra.mxu0 0
    %1199 = vmatprep.subr.bf16.mxu0 0
    %1200 = vmatpush2.bf16.msra.mxu0 0
    %1201 = vmatprep.subr.bf16.mxu0 0
    %1202 = vmatpush2.bf16.msra.mxu0 0
    %1203 = vmatprep.subr.bf16.mxu0 0
    %1204 = vmatpush2.bf16.msra.mxu0 0
    %1205 = vmatprep.subr.bf16.mxu0 0
    %1206 = vmatpush2.bf16.msra.mxu0 0
    %1207 = vmatprep.mubr.bf16.mxu0 0
    %1208 = vmatmul.mubr.bf16.gmra.mxu0 %v1173
    %v1209 = vpop.f32.mrf.mxu0
    %v1210 = vadd.f32 0.0, %v1209
    %v1211 = vpop.f32.mrf.mxu0
    %v1212 = vpop.f32.mrf.mxu0
    %v1213 = vadd.f32 0.0, %v1212
    %v1214 = vpop.f32.mrf.mxu0
    %1215 = vdwg.mxu0
    %v1216 = vld [vmem:[%s2 + $0xd] sm:$0x1]
    %v1217 = vlaneseq
    %v1218 = vshrl.u32 %v1217, 7
    %v1219 = vsub.s32 0, %v1218
    %v1220 = vrot.slane %v1216, %v1219
    %v1221 = vadd.f32 %v1210, %v1220
    %v1222 = vadd.f32 %v1213, %v1220
    %v1223 = vadd.f32 %v1221, %v771
    %v1224 = vadd.f32 %v1222, %v772
    %v1225 = vld [vmem:[%s2 + $0xe] sm:$0x1]
    %v1226 = vld [vmem:[%s2 + $0xf] sm:$0x1]
    %v1227 = vsel %vm23, %v1223, 0.0
    %1228 = vadd.xlane.f32.xlu0 %v1227
    %v1229 = vpop.xlane.xlu0 %1228
    %v1230 = vsel %vm23, %v1224, 0.0
    %1231 = vadd.xlane.f32.xlu0 %v1230
    %v1232 = vpop.xlane.xlu0 %1231
    %v1233 = vmul.f32 %v1229, %v30
    %v1234 = vmul.f32 %v1232, %v30
    %v1235 = vsub.f32 %v1223, %v1233
    %v1236 = vsub.f32 %v1224, %v1234
    %v1237 = vmul.f32 %v1235, %v1235
    %v1238 = vmul.f32 %v1236, %v1236
    %v1239 = vsel %vm23, %v1237, 0.0
    %1240 = vadd.xlane.f32.xlu0 %v1239
    %v1241 = vpop.xlane.xlu0 %1240
    %v1242 = vsel %vm23, %v1238, 0.0
    %1243 = vadd.xlane.f32.xlu0 %v1242
    %v1244 = vpop.xlane.xlu0 %1243
    %v1245 = vmul.f32 %v1241, %v30
    %v1246 = vmul.f32 %v1244, %v30
    %v1247 = vadd.f32 %v1245, 1e-12
    %v1248 = vadd.f32 %v1246, 1e-12
    %v1249 = vrsqrt.pop %v1247
    %v1250 = vrsqrt.pop %v1248
    %v1251 = vmul.f32 %v1235, %v1249
    %v1252 = vmul.f32 %v1236, %v1250
    %v1253 = vlaneseq
    %v1254 = vshrl.u32 %v1253, 7
    %v1255 = vsub.s32 0, %v1254
    %v1256 = vrot.slane %v1225, %v1255
    %v1257 = vmul.f32 %v1251, %v1256
    %v1258 = vmul.f32 %v1252, %v1256
    %v1259 = vlaneseq
    %v1260 = vshrl.u32 %v1259, 7
    %v1261 = vsub.s32 0, %v1260
    %v1262 = vrot.slane %v1226, %v1261
    %v1263 = vadd.f32 %v1257, %v1262
    %v1264 = vadd.f32 %v1258, %v1262
    %v1265 = vpack.c.bf16 %v1264, %v1263
    %v1270 = vunpack.c.l.b16 %v784
    %v1271 = vunpack.c.l.b16 %v785
    %v1272 = vunpack.c.l.b16 %v786
    %v1273 = vunpack.c.l.b16 %v787
    %v1274 = vpack.c.b16 %v1271, %v1270
    %v1275 = vpack.c.b16 %v1273, %v1272
    %v1279 = vsel %vm23, %v1265, 0
    %1281 = vmatprep.subr.bf16.mxu0 0
    %1282 = vmatpush1.bf16.msra.mxu0 0
    %1283 = vmatprep.subr.bf16.mxu0 0
    %1284 = vmatpush1.bf16.msra.mxu0 0
    %1285 = vmatprep.subr.bf16.mxu0 0
    %1286 = vmatpush1.bf16.msra.mxu0 0
    %1287 = vmatprep.subr.bf16.mxu0 0
    %1288 = vmatpush1.bf16.msra.mxu0 0
    %1289 = vmatprep.subr.bf16.mxu0 0
    %1290 = vmatpush1.bf16.msra.mxu0 0
    %1291 = vmatprep.subr.bf16.mxu0 0
    %1292 = vmatpush1.bf16.msra.mxu0 0
    %1293 = vmatprep.subr.bf16.mxu0 0
    %1294 = vmatpush1.bf16.msra.mxu0 %v1275
    %1295 = vmatprep.subr.bf16.mxu0 0
    %1296 = vmatpush1.bf16.msra.mxu0 %v1274
    %1297 = vmatprep.subr.bf16.mxu0 0
    %1298 = vmatpush2.bf16.msra.mxu0 0
    %1299 = vmatprep.subr.bf16.mxu0 0
    %1300 = vmatpush2.bf16.msra.mxu0 0
    %1301 = vmatprep.subr.bf16.mxu0 0
    %1302 = vmatpush2.bf16.msra.mxu0 0
    %1303 = vmatprep.subr.bf16.mxu0 0
    %1304 = vmatpush2.bf16.msra.mxu0 0
    %1305 = vmatprep.subr.bf16.mxu0 0
    %1306 = vmatpush2.bf16.msra.mxu0 0
    %1307 = vmatprep.subr.bf16.mxu0 0
    %1308 = vmatpush2.bf16.msra.mxu0 0
    %1309 = vmatprep.subr.bf16.mxu0 0
    %1310 = vmatpush2.bf16.msra.mxu0 0
    %1311 = vmatprep.subr.bf16.mxu0 0
    %1312 = vmatpush2.bf16.msra.mxu0 0
    %1313 = vmatprep.mubr.bf16.mxu0 0
    %1314 = vmatmul.mubr.bf16.gmra.mxu0 %v1279
    %v1315 = vpop.f32.mrf.mxu0
    %v1316 = vadd.f32 0.0, %v1315
    %v1317 = vpop.f32.mrf.mxu0
    %v1318 = vpop.f32.mrf.mxu0
    %v1319 = vadd.f32 0.0, %v1318
    %v1320 = vpop.f32.mrf.mxu0
    %1321 = vdwg.mxu0
    %v1322 = vld [vmem:[%s2 + $0x10] sm:$0x1]
    %v1323 = vlaneseq
    %v1324 = vshrl.u32 %v1323, 7
    %v1325 = vsub.s32 0, %v1324
    %v1326 = vrot.slane %v1322, %v1325
    %v1327 = vadd.f32 %v1316, %v1326
    %v1328 = vadd.f32 %v1319, %v1326
    %v1329 = vmul.f32 %v1327, 0.5
    %v1330 = vmul.f32 %v1328, 0.5
    %v1331 = vmul.f32 %v1327, 0.044715
    %v1332 = vmul.f32 %v1328, 0.044715
    %v1333 = vmul.f32 %v1331, %v1327
    %v1334 = vmul.f32 %v1332, %v1328
    %v1335 = vmul.f32 %v1333, %v1327
    %v1336 = vmul.f32 %v1334, %v1328
    %v1337 = vadd.f32 %v1327, %v1335
    %v1338 = vadd.f32 %v1328, %v1336
    %v1339 = vmul.f32 %v1337, 0.7978846
    %v1340 = vmul.f32 %v1338, 0.7978846
    %v1341 = vtanh.pop %v1339
    %v1342 = vtanh.pop %v1340
    %v1343 = vadd.f32 %v1341, 1.0
    %v1344 = vadd.f32 %v1342, 1.0
    %v1345 = vmul.f32 %v1329, %v1343
    %v1346 = vmul.f32 %v1330, %v1344
    %v1347 = vpack.c.bf16 %v1346, %v1345
    %v1356 = vunpack.c.l.b16 %v789
    %v1357 = vunpack.c.l.b16 %v790
    %v1358 = vunpack.c.l.b16 %v791
    %v1359 = vunpack.c.l.b16 %v792
    %v1360 = vunpack.c.l.b16 %v793
    %v1361 = vunpack.c.l.b16 %v794
    %v1362 = vunpack.c.l.b16 %v795
    %v1363 = vunpack.c.l.b16 %v796
    %v1364 = vpack.c.b16 %v1357, %v1356
    %v1365 = vpack.c.b16 %v1359, %v1358
    %v1366 = vpack.c.b16 %v1361, %v1360
    %v1367 = vpack.c.b16 %v1363, %v1362
    %v1373 = vsel %vm679, %v1347, 0
    %1375 = vmatprep.subr.bf16.mxu0 0
    %1376 = vmatpush1.bf16.msra.mxu0 0
    %1377 = vmatprep.subr.bf16.mxu0 0
    %1378 = vmatpush1.bf16.msra.mxu0 0
    %1379 = vmatprep.subr.bf16.mxu0 0
    %1380 = vmatpush1.bf16.msra.mxu0 0
    %1381 = vmatprep.subr.bf16.mxu0 0
    %1382 = vmatpush1.bf16.msra.mxu0 0
    %1383 = vmatprep.subr.bf16.mxu0 0
    %1384 = vmatpush1.bf16.msra.mxu0 %v1367
    %1385 = vmatprep.subr.bf16.mxu0 0
    %1386 = vmatpush1.bf16.msra.mxu0 %v1366
    %1387 = vmatprep.subr.bf16.mxu0 0
    %1388 = vmatpush1.bf16.msra.mxu0 %v1365
    %1389 = vmatprep.subr.bf16.mxu0 0
    %1390 = vmatpush1.bf16.msra.mxu0 %v1364
    %1391 = vmatprep.subr.bf16.mxu0 0
    %1392 = vmatpush2.bf16.msra.mxu0 0
    %1393 = vmatprep.subr.bf16.mxu0 0
    %1394 = vmatpush2.bf16.msra.mxu0 0
    %1395 = vmatprep.subr.bf16.mxu0 0
    %1396 = vmatpush2.bf16.msra.mxu0 0
    %1397 = vmatprep.subr.bf16.mxu0 0
    %1398 = vmatpush2.bf16.msra.mxu0 0
    %1399 = vmatprep.subr.bf16.mxu0 0
    %1400 = vmatpush2.bf16.msra.mxu0 0
    %1401 = vmatprep.subr.bf16.mxu0 0
    %1402 = vmatpush2.bf16.msra.mxu0 0
    %1403 = vmatprep.subr.bf16.mxu0 0
    %1404 = vmatpush2.bf16.msra.mxu0 0
    %1405 = vmatprep.subr.bf16.mxu0 0
    %1406 = vmatpush2.bf16.msra.mxu0 0
    %1407 = vmatprep.mubr.bf16.mxu0 0
    %1408 = vmatmul.mubr.bf16.gmra.mxu0 %v1373
    %v1409 = vpop.f32.mrf.mxu0
    %v1410 = vadd.f32 0.0, %v1409
    %v1411 = vpop.f32.mrf.mxu0
    %v1412 = vpop.f32.mrf.mxu0
    %v1413 = vadd.f32 0.0, %v1412
    %v1414 = vpop.f32.mrf.mxu0
    %1415 = vdwg.mxu0
    %v1416 = vld [vmem:[%s2 + $0x11] sm:$0x1]
    %v1417 = vlaneseq
    %v1418 = vshrl.u32 %v1417, 7
    %v1419 = vsub.s32 0, %v1418
    %v1420 = vrot.slane %v1416, %v1419
    %v1421 = vadd.f32 %v1410, %v1420
    %v1422 = vadd.f32 %v1413, %v1420
    %v1423 = vadd.f32 %v1421, %v1263
    %v1424 = vadd.f32 %v1422, %v1264
    %v1425 = vld [vmem:[%s2 + $0x12] sm:$0x1]
    %v1426 = vld [vmem:[%s2 + $0x13] sm:$0x1]
    %v1427 = vsel %vm23, %v1423, 0.0
    %1428 = vadd.xlane.f32.xlu0 %v1427
    %v1429 = vpop.xlane.xlu0 %1428
    %v1430 = vsel %vm23, %v1424, 0.0
    %1431 = vadd.xlane.f32.xlu0 %v1430
    %v1432 = vpop.xlane.xlu0 %1431
    %v1433 = vmul.f32 %v1429, %v30
    %v1434 = vmul.f32 %v1432, %v30
    %v1435 = vsub.f32 %v1423, %v1433
    %v1436 = vsub.f32 %v1424, %v1434
    %v1437 = vmul.f32 %v1435, %v1435
    %v1438 = vmul.f32 %v1436, %v1436
    %v1439 = vsel %vm23, %v1437, 0.0
    %1440 = vadd.xlane.f32.xlu0 %v1439
    %v1441 = vpop.xlane.xlu0 %1440
    %v1442 = vsel %vm23, %v1438, 0.0
    %1443 = vadd.xlane.f32.xlu0 %v1442
    %v1444 = vpop.xlane.xlu0 %1443
    %v1445 = vmul.f32 %v1441, %v30
    %v1446 = vmul.f32 %v1444, %v30
    %v1447 = vadd.f32 %v1445, 1e-12
    %v1448 = vadd.f32 %v1446, 1e-12
    %v1449 = vrsqrt.pop %v1447
    %v1450 = vrsqrt.pop %v1448
    %v1451 = vmul.f32 %v1435, %v1449
    %v1452 = vmul.f32 %v1436, %v1450
    %v1453 = vlaneseq
    %v1454 = vshrl.u32 %v1453, 7
    %v1455 = vsub.s32 0, %v1454
    %v1456 = vrot.slane %v1425, %v1455
    %v1457 = vmul.f32 %v1451, %v1456
    %v1458 = vmul.f32 %v1452, %v1456
    %v1459 = vlaneseq
    %v1460 = vshrl.u32 %v1459, 7
    %v1461 = vsub.s32 0, %v1460
    %v1462 = vrot.slane %v1426, %v1461
    %v1463 = vadd.f32 %v1457, %v1462
    %v1464 = vadd.f32 %v1458, %v1462
    %1465 = vst.msk [vmem:[#allocation2] sm:$0xff] %vm23, %v1463
    %1466 = vst.msk [vmem:[#allocation2 + $0x8] sm:$0xff] %vm23, %v1464
    %v1467 = vld [vmem:[#allocation2] ss:$8 sm:$0x3]
    %v1468 = vpack.c.bf16 %v1467, %v1467
    %s1469 = scalar_lea.vmem %s1, 256
    %v1470 = vld [vmem:[%s1469] sm:$0xf]
    %v1471 = vld [vmem:[%s1469 + $0x4] sm:$0xf]
    %v1472 = vld [vmem:[%s1469 + $0x8] sm:$0xf]
    %v1473 = vld [vmem:[%s1469 + $0xc] sm:$0xf]
    %v1478 = vunpack.c.l.b16 %v1470
    %v1479 = vunpack.c.l.b16 %v1471
    %v1480 = vunpack.c.l.b16 %v1472
    %v1481 = vunpack.c.l.b16 %v1473
    %v1482 = vpack.c.b16 %v1479, %v1478
    %v1483 = vpack.c.b16 %v1481, %v1480
    %v1487 = vsel %vm23, %v1468, 0
    %1489 = vmatprep.subr.bf16.mxu0 0
    %1490 = vmatpush1.bf16.msra.mxu0 0
    %1491 = vmatprep.subr.bf16.mxu0 0
    %1492 = vmatpush1.bf16.msra.mxu0 0
    %1493 = vmatprep.subr.bf16.mxu0 0
    %1494 = vmatpush1.bf16.msra.mxu0 0
    %1495 = vmatprep.subr.bf16.mxu0 0
    %1496 = vmatpush1.bf16.msra.mxu0 0
    %1497 = vmatprep.subr.bf16.mxu0 0
    %1498 = vmatpush1.bf16.msra.mxu0 0
    %1499 = vmatprep.subr.bf16.mxu0 0
    %1500 = vmatpush1.bf16.msra.mxu0 0
    %1501 = vmatprep.subr.bf16.mxu0 0
    %1502 = vmatpush1.bf16.msra.mxu0 %v1483
    %1503 = vmatprep.subr.bf16.mxu0 0
    %1504 = vmatpush1.bf16.msra.mxu0 %v1482
    %1505 = vmatprep.subr.bf16.mxu0 0
    %1506 = vmatpush2.bf16.msra.mxu0 0
    %1507 = vmatprep.subr.bf16.mxu0 0
    %1508 = vmatpush2.bf16.msra.mxu0 0
    %1509 = vmatprep.subr.bf16.mxu0 0
    %1510 = vmatpush2.bf16.msra.mxu0 0
    %1511 = vmatprep.subr.bf16.mxu0 0
    %1512 = vmatpush2.bf16.msra.mxu0 0
    %1513 = vmatprep.subr.bf16.mxu0 0
    %1514 = vmatpush2.bf16.msra.mxu0 0
    %1515 = vmatprep.subr.bf16.mxu0 0
    %1516 = vmatpush2.bf16.msra.mxu0 0
    %1517 = vmatprep.subr.bf16.mxu0 0
    %1518 = vmatpush2.bf16.msra.mxu0 0
    %1519 = vmatprep.subr.bf16.mxu0 0
    %1520 = vmatpush2.bf16.msra.mxu0 0
    %1521 = vmatprep.mubr.bf16.mxu0 0
    %1522 = vmatmul.mubr.bf16.gmra.mxu0 %v1487
    %v1523 = vpop.f32.mrf.mxu0
    %v1524 = vadd.f32 0.0, %v1523
    %v1525 = vpop.f32.mrf.mxu0
    %v1526 = vpop.f32.mrf.mxu0
    %v1527 = vpop.f32.mrf.mxu0
    %1528 = vdwg.mxu0
    %v1529 = vld [vmem:[%s2 + $0x2] sm:$0x1]
    %v1530 = vlaneseq
    %v1531 = vshrl.u32 %v1530, 7
    %v1532 = vsub.s32 0, %v1531
    %v1533 = vrot.slane %v1529, %v1532
    %v1534 = vadd.f32 %v1524, %v1533
    %v1535 = vtanh.pop %v1534
    %v1536 = vpack.c.bf16 %v1535, %v1535
    %s1537 = scalar_lea.vmem %s1, 288
    %v1538 = vld [vmem:[%s1537] sm:$0xf]
    %v1539 = vld [vmem:[%s1537 + $0x4] sm:$0xf]
    %v1540 = vld [vmem:[%s1537 + $0x8] sm:$0xf]
    %v1541 = vld [vmem:[%s1537 + $0xc] sm:$0xf]
    %v1546 = vunpack.c.l.b16 %v1538
    %v1547 = vunpack.c.l.b16 %v1539
    %v1548 = vunpack.c.l.b16 %v1540
    %v1549 = vunpack.c.l.b16 %v1541
    %v1550 = vpack.c.b16 %v1547, %v1546
    %v1551 = vpack.c.b16 %v1549, %v1548
    %v1555 = vsel %vm23, %v1536, 0
    %1557 = vmatprep.subr.bf16.mxu0 0
    %1558 = vmatpush1.bf16.msra.mxu0 0
    %1559 = vmatprep.subr.bf16.mxu0 0
    %1560 = vmatpush1.bf16.msra.mxu0 0
    %1561 = vmatprep.subr.bf16.mxu0 0
    %1562 = vmatpush1.bf16.msra.mxu0 0
    %1563 = vmatprep.subr.bf16.mxu0 0
    %1564 = vmatpush1.bf16.msra.mxu0 0
    %1565 = vmatprep.subr.bf16.mxu0 0
    %1566 = vmatpush1.bf16.msra.mxu0 0
    %1567 = vmatprep.subr.bf16.mxu0 0
    %1568 = vmatpush1.bf16.msra.mxu0 0
    %1569 = vmatprep.subr.bf16.mxu0 0
    %1570 = vmatpush1.bf16.msra.mxu0 %v1551
    %1571 = vmatprep.subr.bf16.mxu0 0
    %1572 = vmatpush1.bf16.msra.mxu0 %v1550
    %1573 = vmatprep.subr.bf16.mxu0 0
    %1574 = vmatpush2.bf16.msra.mxu0 0
    %1575 = vmatprep.subr.bf16.mxu0 0
    %1576 = vmatpush2.bf16.msra.mxu0 0
    %1577 = vmatprep.subr.bf16.mxu0 0
    %1578 = vmatpush2.bf16.msra.mxu0 0
    %1579 = vmatprep.subr.bf16.mxu0 0
    %1580 = vmatpush2.bf16.msra.mxu0 0
    %1581 = vmatprep.subr.bf16.mxu0 0
    %1582 = vmatpush2.bf16.msra.mxu0 0
    %1583 = vmatprep.subr.bf16.mxu0 0
    %1584 = vmatpush2.bf16.msra.mxu0 0
    %1585 = vmatprep.subr.bf16.mxu0 0
    %1586 = vmatpush2.bf16.msra.mxu0 0
    %1587 = vmatprep.subr.bf16.mxu0 0
    %1588 = vmatpush2.bf16.msra.mxu0 0
    %1589 = vmatprep.mubr.bf16.mxu0 0
    %1590 = vmatmul.mubr.bf16.gmra.mxu0 %v1555
    %v1591 = vpop.f32.mrf.mxu0
    %v1592 = vadd.f32 0.0, %v1591
    %v1593 = vpop.f32.mrf.mxu0
    %v1594 = vpop.f32.mrf.mxu0
    %v1595 = vpop.f32.mrf.mxu0
    %1596 = vdwg.mxu0
    %v1597 = vld [vmem:[%s2 + $0x3] sm:$0x1]
    %v1598 = vlaneseq
    %v1599 = vshrl.u32 %v1598, 7
    %v1600 = vsub.s32 0, %v1599
    %v1601 = vrot.slane %v1597, %v1600
    %v1602 = vadd.f32 %v1592, %v1601
    %vm1603 = vcmask 123904
    %1604 = vst.msk [vmem:[#allocation3] sm:$0x3] %vm1603, %v1602
    // Predicated region
    $region18: #{bert_encoder_forward.1} parent=1 // pred_check
      _
    $region19: #{bert_encoder_forward.1} parent=1 // pred_check_branch
      %1606 = sbr.rel (0) target = $region21
    $region20: #{bert_encoder_forward.1} parent=1 // pred_region
      %s1608 = ssub.s32 32, 32
      %1609 = vsyncadd [#allocation4], %s1608
      %s1611 = sshll.u32 [#allocation3], 4
      %s1612 = int_to_ptr.vmem [resolvable:$true] %s1611
      %1614 = dma.vmem_to_hbm [thread:$0]  %s1612, 32, %s4, [#allocation4]
    $region21: #{bert_encoder_forward.1} parent=1 // pred_fallthru
      _
    // Predicated region
    $region22: #{bert_encoder_forward.1} parent=1 // pred_check
      _
    $region23: #{bert_encoder_forward.1} parent=1 // pred_check_branch
      %1616 = sbr.rel (0) target = $region25
    $region24: #{bert_encoder_forward.1} parent=1 // pred_region
      %1617 = dma.done [#allocation4], 32
    $region25: #{bert_encoder_forward.1} parent=1 // pred_fallthru
      _
    %1618 = vsyncpa [#allocation4], 1

</llo_original>
